<compile_context>
chip_gen: v5e
topology: v5e:2x2
jax: 0.10.0
libtpu: 0.0.40
codegen_flags: <defaults>
</compile_context>

<pallas_src>
import functools
import math

import numpy as np
import jax
import jax.numpy as jnp
from jax import lax
from jax.experimental import pallas as pl
from jax.experimental.pallas import tpu as pltpu

# ----------------------- model / demo configuration -----------------------
BATCH      = 32    # demo batch (wrapper handles any B)
MAXLEN     = 8     # L (args.maxlen)
HIDDEN     = 32    # H (args.hidden_units)
NUM_HEADS  = 2     # args.num_heads
NUM_BLOCKS = 2     # args.num_blocks
ITEM_NUM   = 50
GEO_NUM    = 20
DIS_NUM    = 20
EPS        = 1e-8  # LayerNorm eps
SUB_SEQS   = 16    # sequences per 128-row compute sub-tile (16 * 8 = 128 rows)
NEG_INF    = -1e30

assert HIDDEN % NUM_HEADS == 0


def _layernorm(x, w, b):
    # x: (R, H) f32, w/b: (1, H) f32  (torch.nn.LayerNorm(H, eps=1e-8), biased var)
    mu = jnp.mean(x, axis=-1, keepdims=True)
    xc = x - mu
    var = jnp.mean(xc * xc, axis=-1, keepdims=True)
    return xc * lax.rsqrt(var + EPS) * w + b


# ------------------------------- the kernel -------------------------------
def sasrec_kernel(seqs0_ref, valid_ref, pos_ref, neg_ref,          # activations
                  mask_ref, wqkv_ref, wout_ref, wff_ref,            # consts
                  vec_ref, bq_ref, lastln_ref,
                  logits_ref,                                       # output (2, R)
                  *, nh, nb, subr, n_sub):
    f32, bf16 = jnp.float32, jnp.bfloat16
    H = seqs0_ref.shape[1]

    mask = mask_ref[...]                     # (subr, subr) additive bias (0 / -1e30)
    last_w = lastln_ref[0:1, :]
    last_b = lastln_ref[1:2, :]
    ones1 = jnp.ones((1, H), bf16)           # row-sum selector for the logits dots

    for st in range(n_sub):                  # static unroll over 128-row sub-tiles
        r0 = st * subr
        r1 = r0 + subr
        seqs = seqs0_ref[r0:r1, :]           # (subr, H) f32, already timeline-masked
        valid = valid_ref[r0:r1, :]          # (subr, 1) f32

        for blk in range(nb):
            vec = vec_ref[blk]               # (7, H)  f32: LN params + biases
            bqs = bq_ref[blk]                # (nh+1, 2H) f32: per-head q bias, [bk|bv]

            # Q = LayerNorm(seqs); K/V come from the *unnormalized* seqs (torch code)
            q_in = _layernorm(seqs, vec[0:1], vec[1:2])
            q_b = q_in.astype(bf16)

            # fused [K | V] projection: one (subr,H)@(H,2H) bf16 MXU dot
            kv = jnp.dot(seqs.astype(bf16), wqkv_ref[blk, nh],
                         preferred_element_type=f32) + bqs[nh:nh + 1]
            kv_b = kv.astype(bf16)

            mha = jnp.zeros((subr, H), f32)
            for h in range(nh):
                # per-head Q page: scale folded in, nonzero only in head-h K lanes
                qh = jnp.dot(q_b, wqkv_ref[blk, h],
                             preferred_element_type=f32) + bqs[h:h + 1]
                s = lax.dot_general(qh.astype(bf16), kv_b,
                                    (((1,), (1,)), ((), ())),
                                    preferred_element_type=f32)     # (subr, subr)
                s = s + mask                                        # additive causal/block mask
                m = jnp.max(s, axis=-1, keepdims=True)
                e = jnp.exp(s - m)
                p = e * pl.reciprocal(jnp.sum(e, axis=-1, keepdims=True), approx=True)
                ctx = jnp.dot(p.astype(bf16), kv_b,
                              preferred_element_type=f32)           # (subr, 2H)
                # per-head out-proj page is zero outside head-h's V rows
                mha = mha + jnp.dot(ctx.astype(bf16), wout_ref[blk, h],
                                    preferred_element_type=f32)     # (subr, H)

            seqs = q_in + mha + vec[4:5]     # residual on LN'd query + out_proj bias

            # PointWiseFeedForward (conv1d k=1 == linear), residual on LN'd input
            x = _layernorm(seqs, vec[2:3], vec[3:4])
            h1 = jnp.maximum(jnp.dot(x.astype(bf16), wff_ref[blk, 0],
                                     preferred_element_type=f32) + vec[5:6], 0.0)
            h2 = jnp.dot(h1.astype(bf16), wff_ref[blk, 1],
                         preferred_element_type=f32) + vec[6:7]
            seqs = (h2 + x) * valid          # timeline mask again

        log_feats = _layernorm(seqs, last_w, last_b)                # (subr, H)

        # lane-dense logits: row-sums on the MXU, stored straight into the block
        prow = lax.dot_general(ones1, (log_feats * pos_ref[r0:r1, :]).astype(bf16),
                               (((1,), (1,)), ((), ())), preferred_element_type=f32)
        nrow = lax.dot_general(ones1, (log_feats * neg_ref[r0:r1, :]).astype(bf16),
                               (((1,), (1,)), ((), ())), preferred_element_type=f32)
        logits_ref[0:1, r0:r1] = prow
        logits_ref[1:2, r0:r1] = nrow


# -------------------------- parameters & weight prep ----------------------
def init_params(key):
    """Deterministic synthetic parameters with the shapes SASRec.__init__ creates."""
    H, NB = HIDDEN, NUM_BLOCKS
    ks = jax.random.split(key, 13)
    p = {}
    p['pos_emb'] = 0.02 * jax.random.normal(ks[0], (MAXLEN, H), jnp.float32)
    item = 0.02 * jax.random.normal(ks[1], (ITEM_NUM + 1, H), jnp.float32)
    p['item_emb'] = item.at[0].set(0.0)                    # padding_idx=0
    geo = 0.02 * jax.random.normal(ks[2], (GEO_NUM + 1, H), jnp.float32)
    p['geo_emb'] = geo.at[0].set(0.0)
    dis = 0.02 * jax.random.normal(ks[3], (DIS_NUM + 1, H), jnp.float32)
    p['dis_emb'] = dis.at[0].set(0.0)
    p['weight_s'] = 0.05 * jax.random.normal(ks[4], (H, H), jnp.float32)

    p['attn_ln_w'] = jnp.ones((NB, H), jnp.float32)
    p['attn_ln_b'] = jnp.zeros((NB, H), jnp.float32)
    p['in_proj_w'] = 0.05 * jax.random.normal(ks[5], (NB, 3 * H, H), jnp.float32)   # torch (3H, H)
    p['in_proj_b'] = 0.01 * jax.random.normal(ks[6], (NB, 3 * H), jnp.float32)
    p['out_proj_w'] = 0.05 * jax.random.normal(ks[7], (NB, H, H), jnp.float32)      # torch (out, in)
    p['out_proj_b'] = 0.01 * jax.random.normal(ks[8], (NB, H), jnp.float32)
    p['fwd_ln_w'] = jnp.ones((NB, H), jnp.float32)
    p['fwd_ln_b'] = jnp.zeros((NB, H), jnp.float32)
    p['conv1_w'] = 0.05 * jax.random.normal(ks[9], (NB, H, H), jnp.float32)         # conv1d k=1 squeezed
    p['conv1_b'] = 0.01 * jax.random.normal(ks[10], (NB, H), jnp.float32)
    p['conv2_w'] = 0.05 * jax.random.normal(ks[11], (NB, H, H), jnp.float32)
    p['conv2_b'] = 0.01 * jax.random.normal(ks[12], (NB, H), jnp.float32)
    p['last_ln_w'] = jnp.ones((H,), jnp.float32)
    p['last_ln_b'] = jnp.zeros((H,), jnp.float32)
    return p


def prepare_weights(p):
    """One-time weight preprocessing (transposes, head folding, packing, bf16 cast).

    Done once per parameter set, NOT inside the per-step forward.
    """
    H, NB, nh = HIDDEN, NUM_BLOCKS, NUM_HEADS
    hd = H // nh
    scale = 1.0 / math.sqrt(hd)
    f32, bf16 = jnp.float32, jnp.bfloat16

    ipw = p['in_proj_w']                                  # (NB, 3H, H) torch (out, in)
    wq_t = jnp.swapaxes(ipw[:, 0:H, :], 1, 2)             # (NB, H_in, H_out)
    wk_t = jnp.swapaxes(ipw[:, H:2 * H, :], 1, 2)
    wv_t = jnp.swapaxes(ipw[:, 2 * H:, :], 1, 2)

    # per-head Q pages in the fused [K | V] 2H-lane layout, 1/sqrt(hd) scale folded in
    wq_pages = []
    for h in range(nh):
        page = jnp.zeros((NB, H, 2 * H), f32)
        page = page.at[:, :, h * hd:(h + 1) * hd].set(wq_t[:, :, h * hd:(h + 1) * hd] * scale)
        wq_pages.append(page)
    kv_page = jnp.concatenate([wk_t, wv_t], axis=2)       # (NB, H, 2H)
    wqkv = jnp.stack(wq_pages + [kv_page], axis=1).astype(bf16)   # (NB, nh+1, H, 2H)

    ipb = p['in_proj_b']                                  # (NB, 3H)
    bq, bk, bv = ipb[:, 0:H], ipb[:, H:2 * H], ipb[:, 2 * H:]
    bq_rows = []
    for h in range(nh):
        row = jnp.zeros((NB, 2 * H), f32)
        row = row.at[:, h * hd:(h + 1) * hd].set(bq[:, h * hd:(h + 1) * hd] * scale)
        bq_rows.append(row)
    bkv = jnp.concatenate([bk, bv], axis=1)               # (NB, 2H)
    bq2 = jnp.stack(bq_rows + [bkv], axis=1)              # (NB, nh+1, 2H) f32

    # per-head out-proj pages: zero outside head-h's V rows of the 2H contraction dim
    wo_t = jnp.swapaxes(p['out_proj_w'], 1, 2)            # (NB, H_in(attn), H_out)
    wout_pages = []
    for h in range(nh):
        page = jnp.zeros((NB, 2 * H, H), f32)
        page = page.at[:, H + h * hd:H + (h + 1) * hd, :].set(wo_t[:, h * hd:(h + 1) * hd, :])
        wout_pages.append(page)
    wout = jnp.stack(wout_pages, axis=1).astype(bf16)     # (NB, nh, 2H, H)

    wff = jnp.stack([jnp.swapaxes(p['conv1_w'], 1, 2),
                     jnp.swapaxes(p['conv2_w'], 1, 2)], axis=1).astype(bf16)   # (NB, 2, H, H)

    # LN params + f32 biases (stay f32: added to f32 accumulators)
    vec = jnp.stack([p['attn_ln_w'], p['attn_ln_b'],
                     p['fwd_ln_w'], p['fwd_ln_b'],
                     p['out_proj_b'], p['conv1_b'], p['conv2_b']], axis=1)     # (NB, 7, H)
    lastln = jnp.stack([p['last_ln_w'], p['last_ln_b']], axis=0)               # (2, H)

    return {
        'item_emb': p['item_emb'], 'pos_emb': p['pos_emb'],
        'geo_emb': p['geo_emb'], 'dis_emb': p['dis_emb'],
        'wsI': p['weight_s'] + jnp.eye(H, dtype=f32),      # weight_s + I, folded once
        'wqkv': wqkv, 'wout': wout, 'wff': wff,
        'vec': vec, 'bq2': bq2, 'lastln': lastln,
    }


# ------------------------------ forward wrapper ----------------------------
def _choose_bt(B):
    """Sequences per grid step.

    Prefer >=8 grid steps (>=4 per TensorCore on v7x megacore) but keep at least
    4 sequences (32 sublane rows) per step; for large batches grow to multiple
    128-row sub-tiles per step (amortizes grid overhead, v6e) while keeping the
    attention score tile fixed at <= (128, 128).
    """
    bt = SUB_SEQS
    while bt > 4 and -(-B // bt) < 8:
        bt //= 2
    while bt < 4 * SUB_SEQS and -(-B // (bt * 2)) >= 8:
        bt *= 2
    return bt


def sasrec_forward(prep, log_seqs, pos_seqs, neg_seqs,
                   geo_seqs, geo_pos_seqs, dis_seqs, dis_pos_seqs):
    """SASRec.forward(...) with fus='None' -> (pos_logits, neg_logits)."""
    B, L = log_seqs.shape
    H, NB, nh = HIDDEN, NUM_BLOCKS, NUM_HEADS
    f32 = jnp.float32
    wsI = prep['wsI']

    # ---- glue: embedding gathers + side-info folds (plain JAX; fuses with gathers)
    geodis = prep['geo_emb'][geo_seqs] + prep['dis_emb'][dis_seqs]            # (B, L, H)
    valid = (log_seqs != 0).astype(f32)[:, :, None]                           # (B, L, 1)
    seqs0 = (prep['item_emb'][log_seqs] * (H ** 0.5)
             + prep['pos_emb'][None, :L, :]
             + geodis @ wsI) * valid                                          # pre timeline-masked
    side = (prep['geo_emb'][geo_pos_seqs] + prep['dis_emb'][dis_pos_seqs]) @ wsI
    pos_embs = prep['item_emb'][pos_seqs] + side
    neg_embs = prep['item_emb'][neg_seqs] + side

    # ---- tiling: pad batch, flatten sequences onto sublanes ----
    bt = _choose_bt(B)
    nt = -(-B // bt)
    Bp = nt * bt
    pad = Bp - B
    R = bt * L                                     # rows per grid step
    subr = 128 if (R % 128 == 0) else R            # rows per compute sub-tile
    assert R % subr == 0 and R % 8 == 0 and subr % L == 0
    n_sub = R // subr

    def prep_act(x):
        if pad:
            x = jnp.pad(x, ((0, pad), (0, 0), (0, 0)))
        return x.reshape(Bp * L, x.shape[-1])

    seqs0, valid, pos_embs, neg_embs = map(prep_act, (seqs0, valid, pos_embs, neg_embs))

    # ---- block-diagonal + causal additive mask for one sub-tile (compile-time const)
    idx = np.arange(subr)
    allowed = (idx[None, :] // L == idx[:, None] // L) & (idx[None, :] <= idx[:, None])
    mask = jnp.asarray(np.where(allowed, 0.0, NEG_INF), dtype=f32)            # (subr, subr)

    consts = (mask, prep['wqkv'], prep['wout'], prep['wff'],
              prep['vec'], prep['bq2'], prep['lastln'])

    act_spec = pl.BlockSpec((R, H), lambda t: (t, 0))
    valid_spec = pl.BlockSpec((R, 1), lambda t: (t, 0))
    const_specs = [pl.BlockSpec(c.shape, lambda t, _n=c.ndim: (0,) * _n) for c in consts]

    out_spec = pl.BlockSpec((None, 2, R), lambda t: (t, 0, 0))   # kernel sees (2, R)
    out_shape = jax.ShapeDtypeStruct((nt, 2, R), f32)

    kernel = functools.partial(sasrec_kernel, nh=nh, nb=NB, subr=subr, n_sub=n_sub)

    logits = pl.pallas_call(
        kernel,
        grid=(nt,),
        in_specs=[act_spec, valid_spec, act_spec, act_spec] + const_specs,
        out_specs=out_spec,
        out_shape=out_shape,
        compiler_params=pltpu.CompilerParams(
            dimension_semantics=("parallel",),        # shard batch-tile steps across TCs
            vmem_limit_bytes=32 * 1024 * 1024,        # conservative; per-step footprint < 2 MiB
        ),
    )(seqs0, valid, pos_embs, neg_embs, *consts)

    logits = jnp.transpose(logits, (1, 0, 2)).reshape(2, Bp * L)
    pos_logits = logits[0].reshape(Bp, L)[:B]
    neg_logits = logits[1].reshape(Bp, L)[:B]
    return pos_logits, neg_logits


# ----------------------------- pure-JAX reference --------------------------
def sasrec_reference(p, log_seqs, pos_seqs, neg_seqs,
                     geo_seqs, geo_pos_seqs, dis_seqs, dis_pos_seqs):
    """f32 reference mirroring the torch module (inference-mode dropout)."""
    H, nh, NB = HIDDEN, NUM_HEADS, NUM_BLOCKS
    hd = H // nh
    f32 = jnp.float32
    B, L = log_seqs.shape
    wsI = p['weight_s'] + jnp.eye(H, dtype=f32)

    def ln(x, w, b):
        mu = x.mean(-1, keepdims=True)
        xc = x - mu
        return xc * lax.rsqrt((xc * xc).mean(-1, keepdims=True) + EPS) * w + b

    geodis = p['geo_emb'][geo_seqs] + p['dis_emb'][dis_seqs]
    valid = (log_seqs != 0).astype(f32)[:, :, None]
    seqs = (p['item_emb'][log_seqs] * (H ** 0.5) + p['pos_emb'][None, :L, :] + geodis @ wsI) * valid
    causal = jnp.tril(jnp.ones((L, L), bool))

    for blk in range(NB):
        q_in = ln(seqs, p['attn_ln_w'][blk], p['attn_ln_b'][blk])
        wq, wk, wv = (p['in_proj_w'][blk][i * H:(i + 1) * H] for i in range(3))
        bq, bk, bv = (p['in_proj_b'][blk][i * H:(i + 1) * H] for i in range(3))
        q = (q_in @ wq.T + bq).reshape(B, L, nh, hd)
        k = (seqs @ wk.T + bk).reshape(B, L, nh, hd)
        v = (seqs @ wv.T + bv).reshape(B, L, nh, hd)
        s = jnp.einsum('bqhd,bkhd->bhqk', q, k) / math.sqrt(hd)
        s = jnp.where(causal[None, None], s, -jnp.inf)
        attn = jax.nn.softmax(s, axis=-1)
        ctx = jnp.einsum('bhqk,bkhd->bqhd', attn, v).reshape(B, L, H)
        mha = ctx @ p['out_proj_w'][blk].T + p['out_proj_b'][blk]
        seqs = q_in + mha
        x = ln(seqs, p['fwd_ln_w'][blk], p['fwd_ln_b'][blk])
        h1 = jax.nn.relu(x @ p['conv1_w'][blk].T + p['conv1_b'][blk])
        h2 = h1 @ p['conv2_w'][blk].T + p['conv2_b'][blk]
        seqs = (h2 + x) * valid

    lf = ln(seqs, p['last_ln_w'], p['last_ln_b'])
    side = (p['geo_emb'][geo_pos_seqs] + p['dis_emb'][dis_pos_seqs]) @ wsI
    pos_e = p['item_emb'][pos_seqs] + side
    neg_e = p['item_emb'][neg_seqs] + side
    return (lf * pos_e).sum(-1), (lf * neg_e).sum(-1)


# ------------------------------------ demo ---------------------------------
if __name__ == "__main__":
    key = jax.random.PRNGKey(0)
    kp, kd = jax.random.split(key)
    params = init_params(kp)
    prepared = prepare_weights(params)        # one-time weight prep (not per forward)

    ks = jax.random.split(kd, 8)
    B, L = BATCH, MAXLEN
    log_seqs = jax.random.randint(ks[0], (B, L), 1, ITEM_NUM + 1, dtype=jnp.int32)
    log_seqs = log_seqs.at[0, :2].set(0).at[5, :4].set(0)   # padding exercises timeline mask
    pos_seqs = jax.random.randint(ks[1], (B, L), 1, ITEM_NUM + 1, dtype=jnp.int32)
    neg_seqs = jax.random.randint(ks[2], (B, L), 1, ITEM_NUM + 1, dtype=jnp.int32)
    geo_seqs = jax.random.randint(ks[3], (B, L), 1, GEO_NUM + 1, dtype=jnp.int32)
    geo_pos_seqs = jax.random.randint(ks[4], (B, L), 1, GEO_NUM + 1, dtype=jnp.int32)
    dis_seqs = jax.random.randint(ks[5], (B, L), 1, DIS_NUM + 1, dtype=jnp.int32)
    dis_pos_seqs = jax.random.randint(ks[6], (B, L), 1, DIS_NUM + 1, dtype=jnp.int32)

    # user_ids are unused by SASRec.forward's math (kept out of the kernel on purpose).
    fwd = jax.jit(sasrec_forward)
    pos_logits, neg_logits = fwd(
        prepared, log_seqs, pos_seqs, neg_seqs,
        geo_seqs, geo_pos_seqs, dis_seqs, dis_pos_seqs)
    jax.block_until_ready((pos_logits, neg_logits))
    assert pos_logits.shape == (B, L) and neg_logits.shape == (B, L)

    # loose correctness check vs f32 reference (bf16 MXU + approx reciprocal ~1e-2 rel)
    pos_ref, neg_ref = sasrec_reference(
        params, log_seqs, pos_seqs, neg_seqs,
        geo_seqs, geo_pos_seqs, dis_seqs, dis_pos_seqs)
    np.testing.assert_allclose(np.asarray(pos_logits), np.asarray(pos_ref), atol=5e-2, rtol=5e-2)
    np.testing.assert_allclose(np.asarray(neg_logits), np.asarray(neg_ref), atol=5e-2, rtol=5e-2)

    print("KERNEL_OK")
</pallas_src>

<mosaic_0001>
module attributes {stable_mosaic.version = 11 : i64} {
  func.func @sasrec_kernel(%arg0: i32, %arg1: memref<32x32xf32, #tpu.memory_space<vmem>>, %arg2: memref<32x1xf32, #tpu.memory_space<vmem>>, %arg3: memref<32x32xf32, #tpu.memory_space<vmem>>, %arg4: memref<32x32xf32, #tpu.memory_space<vmem>>, %arg5: memref<32x32xf32, #tpu.memory_space<vmem>>, %arg6: memref<2x3x32x64xbf16, #tpu.memory_space<vmem>>, %arg7: memref<2x2x64x32xbf16, #tpu.memory_space<vmem>>, %arg8: memref<2x2x32x32xbf16, #tpu.memory_space<vmem>>, %arg9: memref<2x7x32xf32, #tpu.memory_space<vmem>>, %arg10: memref<2x3x64xf32, #tpu.memory_space<vmem>>, %arg11: memref<2x32xf32, #tpu.memory_space<vmem>>, %arg12: memref<1x2x32xf32, #tpu.memory_space<vmem>>) attributes {dimension_semantics = [#tpu.dimension_semantics<parallel>], iteration_bounds = array<i64: 8>, scalar_prefetch = 0 : i64, scratch_operands = 0 : i64, tpu.core_type = #tpu.core_type<tc>, window_params = [{transform_indices = @transform_0, window_bounds = array<i64: 32, 32>}, {transform_indices = @transform_1, window_bounds = array<i64: 32, 1>}, {transform_indices = @transform_2, window_bounds = array<i64: 32, 32>}, {transform_indices = @transform_3, window_bounds = array<i64: 32, 32>}, {pipeline_mode = #tpu.pipeline_mode<synchronous>, transform_indices = @transform_4, window_bounds = array<i64: 32, 32>}, {pipeline_mode = #tpu.pipeline_mode<synchronous>, transform_indices = @transform_5, window_bounds = array<i64: 2, 3, 32, 64>}, {pipeline_mode = #tpu.pipeline_mode<synchronous>, transform_indices = @transform_6, window_bounds = array<i64: 2, 2, 64, 32>}, {pipeline_mode = #tpu.pipeline_mode<synchronous>, transform_indices = @transform_7, window_bounds = array<i64: 2, 2, 32, 32>}, {pipeline_mode = #tpu.pipeline_mode<synchronous>, transform_indices = @transform_8, window_bounds = array<i64: 2, 7, 32>}, {pipeline_mode = #tpu.pipeline_mode<synchronous>, transform_indices = @transform_9, window_bounds = array<i64: 2, 3, 64>}, {pipeline_mode = #tpu.pipeline_mode<synchronous>, transform_indices = @transform_10, window_bounds = array<i64: 2, 32>}, {transform_indices = @transform_11, window_bounds = array<i64: 1, 2, 32>}]} {
    %c0 = arith.constant 0 : index
    %c0_0 = arith.constant 0 : index
    %0 = vector.load %arg5[%c0, %c0_0] : memref<32x32xf32, #tpu.memory_space<vmem>>, vector<32x32xf32>
    %c0_1 = arith.constant 0 : index
    %c0_2 = arith.constant 0 : index
    %1 = vector.load %arg11[%c0_1, %c0_2] : memref<2x32xf32, #tpu.memory_space<vmem>>, vector<1x32xf32>
    %c1 = arith.constant 1 : index
    %c0_3 = arith.constant 0 : index
    %2 = vector.load %arg11[%c1, %c0_3] : memref<2x32xf32, #tpu.memory_space<vmem>>, vector<1x32xf32>
    %cst = arith.constant 1.000000e+00 : bf16
    %3 = vector.broadcast %cst : bf16 to vector<1x32xbf16>
    %c0_4 = arith.constant 0 : index
    %c0_5 = arith.constant 0 : index
    %4 = vector.load %arg1[%c0_4, %c0_5] : memref<32x32xf32, #tpu.memory_space<vmem>>, vector<32x32xf32>
    %c0_6 = arith.constant 0 : index
    %c0_7 = arith.constant 0 : index
    %5 = vector.load %arg2[%c0_6, %c0_7] : memref<32x1xf32, #tpu.memory_space<vmem>>, vector<32x1xf32>
    %c0_8 = arith.constant 0 : index
    %c0_9 = arith.constant 0 : index
    %c0_10 = arith.constant 0 : index
    %6 = vector.load %arg9[%c0_8, %c0_9, %c0_10] : memref<2x7x32xf32, #tpu.memory_space<vmem>>, vector<1x7x32xf32>
    %7 = vector.shape_cast %6 : vector<1x7x32xf32> to vector<7x32xf32>
    %c0_11 = arith.constant 0 : index
    %c0_12 = arith.constant 0 : index
    %c0_13 = arith.constant 0 : index
    %8 = vector.load %arg10[%c0_11, %c0_12, %c0_13] : memref<2x3x64xf32, #tpu.memory_space<vmem>>, vector<1x3x64xf32>
    %9 = vector.shape_cast %8 : vector<1x3x64xf32> to vector<3x64xf32>
    %10 = vector.extract_strided_slice %7 {offsets = [0, 0], sizes = [1, 32], strides = [1, 1]} : vector<7x32xf32> to vector<1x32xf32>
    %11 = vector.extract_strided_slice %7 {offsets = [1, 0], sizes = [1, 32], strides = [1, 1]} : vector<7x32xf32> to vector<1x32xf32>
    %cst_14 = arith.constant dense<0.000000e+00> : vector<32xf32>
    %12 = vector.multi_reduction <add>, %4, %cst_14 [1] : vector<32x32xf32> to vector<32xf32>
    %13 = vector.shape_cast %12 : vector<32xf32> to vector<32x1xf32>
    %cst_15 = arith.constant 3.200000e+01 : f32
    %14 = vector.broadcast %cst_15 : f32 to vector<32x1xf32>
    %15 = arith.divf %13, %14 : vector<32x1xf32>
    %16 = vector.broadcast %15 : vector<32x1xf32> to vector<32x32xf32>
    %17 = arith.subf %4, %16 : vector<32x32xf32>
    %18 = arith.mulf %17, %17 : vector<32x32xf32>
    %cst_16 = arith.constant dense<0.000000e+00> : vector<32xf32>
    %19 = vector.multi_reduction <add>, %18, %cst_16 [1] : vector<32x32xf32> to vector<32xf32>
    %20 = vector.shape_cast %19 : vector<32xf32> to vector<32x1xf32>
    %cst_17 = arith.constant 3.200000e+01 : f32
    %21 = vector.broadcast %cst_17 : f32 to vector<32x1xf32>
    %22 = arith.divf %20, %21 : vector<32x1xf32>
    %cst_18 = arith.constant 9.99999993E-9 : f32
    %23 = vector.broadcast %cst_18 : f32 to vector<32x1xf32>
    %24 = arith.addf %22, %23 : vector<32x1xf32>
    %25 = math.rsqrt %24 : vector<32x1xf32>
    %26 = vector.broadcast %25 : vector<32x1xf32> to vector<32x32xf32>
    %27 = arith.mulf %17, %26 : vector<32x32xf32>
    %28 = vector.broadcast %10 : vector<1x32xf32> to vector<32x32xf32>
    %29 = arith.mulf %27, %28 : vector<32x32xf32>
    %30 = vector.broadcast %11 : vector<1x32xf32> to vector<32x32xf32>
    %31 = arith.addf %29, %30 : vector<32x32xf32>
    %32 = arith.truncf %31 : vector<32x32xf32> to vector<32x32xbf16>
    %33 = arith.truncf %4 : vector<32x32xf32> to vector<32x32xbf16>
    %c0_19 = arith.constant 0 : index
    %c2 = arith.constant 2 : index
    %c0_20 = arith.constant 0 : index
    %c0_21 = arith.constant 0 : index
    %34 = vector.load %arg6[%c0_19, %c2, %c0_20, %c0_21] : memref<2x3x32x64xbf16, #tpu.memory_space<vmem>>, vector<1x1x32x64xbf16>
    %35 = vector.shape_cast %34 : vector<1x1x32x64xbf16> to vector<32x64xbf16>
    %cst_22 = arith.constant dense<0.000000e+00> : vector<32x64xf32>
    %36 = tpu.matmul %33, %35, %cst_22 {dimension_numbers = #tpu.dot_dimension_numbers<[1], [0], [0], [1], [0, 0, 1, 1], [], []>} : vector<32x32xbf16>, vector<32x64xbf16>, vector<32x64xf32> -> vector<32x64xf32>
    %37 = vector.extract_strided_slice %9 {offsets = [2, 0], sizes = [1, 64], strides = [1, 1]} : vector<3x64xf32> to vector<1x64xf32>
    %38 = vector.broadcast %37 : vector<1x64xf32> to vector<32x64xf32>
    %39 = arith.addf %36, %38 : vector<32x64xf32>
    %40 = arith.truncf %39 : vector<32x64xf32> to vector<32x64xbf16>
    %cst_23 = arith.constant 0.000000e+00 : f32
    %41 = vector.broadcast %cst_23 : f32 to vector<32x32xf32>
    %c0_24 = arith.constant 0 : index
    %c0_25 = arith.constant 0 : index
    %c0_26 = arith.constant 0 : index
    %c0_27 = arith.constant 0 : index
    %42 = vector.load %arg6[%c0_24, %c0_25, %c0_26, %c0_27] : memref<2x3x32x64xbf16, #tpu.memory_space<vmem>>, vector<1x1x32x64xbf16>
    %43 = vector.shape_cast %42 : vector<1x1x32x64xbf16> to vector<32x64xbf16>
    %cst_28 = arith.constant dense<0.000000e+00> : vector<32x64xf32>
    %44 = tpu.matmul %32, %43, %cst_28 {dimension_numbers = #tpu.dot_dimension_numbers<[1], [0], [0], [1], [0, 0, 1, 1], [], []>} : vector<32x32xbf16>, vector<32x64xbf16>, vector<32x64xf32> -> vector<32x64xf32>
    %45 = vector.extract_strided_slice %9 {offsets = [0, 0], sizes = [1, 64], strides = [1, 1]} : vector<3x64xf32> to vector<1x64xf32>
    %46 = vector.broadcast %45 : vector<1x64xf32> to vector<32x64xf32>
    %47 = arith.addf %44, %46 : vector<32x64xf32>
    %48 = arith.truncf %47 : vector<32x64xf32> to vector<32x64xbf16>
    %cst_29 = arith.constant dense<0.000000e+00> : vector<32x32xf32>
    %49 = tpu.matmul %48, %40, %cst_29 {dimension_numbers = #tpu.dot_dimension_numbers<[1], [1], [0], [0], [0, 0, 1, 0], [], []>} : vector<32x64xbf16>, vector<32x64xbf16>, vector<32x32xf32> -> vector<32x32xf32>
    %50 = arith.addf %49, %0 : vector<32x32xf32>
    %cst_30 = arith.constant dense<0xFF800000> : vector<32xf32>
    %51 = vector.multi_reduction <maximumf>, %50, %cst_30 [1] : vector<32x32xf32> to vector<32xf32>
    %52 = vector.shape_cast %51 : vector<32xf32> to vector<32x1xf32>
    %53 = vector.broadcast %52 : vector<32x1xf32> to vector<32x32xf32>
    %54 = arith.subf %50, %53 : vector<32x32xf32>
    %55 = math.exp %54 : vector<32x32xf32>
    %cst_31 = arith.constant dense<0.000000e+00> : vector<32xf32>
    %56 = vector.multi_reduction <add>, %55, %cst_31 [1] : vector<32x32xf32> to vector<32xf32>
    %57 = vector.shape_cast %56 : vector<32xf32> to vector<32x1xf32>
    %58 = tpu.reciprocal %57 {approx = true} : vector<32x1xf32> -> vector<32x1xf32>
    %59 = vector.broadcast %58 : vector<32x1xf32> to vector<32x32xf32>
    %60 = arith.mulf %55, %59 : vector<32x32xf32>
    %61 = arith.truncf %60 : vector<32x32xf32> to vector<32x32xbf16>
    %cst_32 = arith.constant dense<0.000000e+00> : vector<32x64xf32>
    %62 = tpu.matmul %61, %40, %cst_32 {dimension_numbers = #tpu.dot_dimension_numbers<[1], [0], [0], [1], [0, 0, 1, 1], [], []>} : vector<32x32xbf16>, vector<32x64xbf16>, vector<32x64xf32> -> vector<32x64xf32>
    %63 = arith.truncf %62 : vector<32x64xf32> to vector<32x64xbf16>
    %c0_33 = arith.constant 0 : index
    %c0_34 = arith.constant 0 : index
    %c0_35 = arith.constant 0 : index
    %c0_36 = arith.constant 0 : index
    %64 = vector.load %arg7[%c0_33, %c0_34, %c0_35, %c0_36] : memref<2x2x64x32xbf16, #tpu.memory_space<vmem>>, vector<1x1x64x32xbf16>
    %65 = vector.shape_cast %64 : vector<1x1x64x32xbf16> to vector<64x32xbf16>
    %cst_37 = arith.constant dense<0.000000e+00> : vector<32x32xf32>
    %66 = tpu.matmul %63, %65, %cst_37 {dimension_numbers = #tpu.dot_dimension_numbers<[1], [0], [0], [1], [0, 0, 1, 1], [], []>} : vector<32x64xbf16>, vector<64x32xbf16>, vector<32x32xf32> -> vector<32x32xf32>
    %67 = arith.addf %41, %66 : vector<32x32xf32>
    %c0_38 = arith.constant 0 : index
    %c1_39 = arith.constant 1 : index
    %c0_40 = arith.constant 0 : index
    %c0_41 = arith.constant 0 : index
    %68 = vector.load %arg6[%c0_38, %c1_39, %c0_40, %c0_41] : memref<2x3x32x64xbf16, #tpu.memory_space<vmem>>, vector<1x1x32x64xbf16>
    %69 = vector.shape_cast %68 : vector<1x1x32x64xbf16> to vector<32x64xbf16>
    %cst_42 = arith.constant dense<0.000000e+00> : vector<32x64xf32>
    %70 = tpu.matmul %32, %69, %cst_42 {dimension_numbers = #tpu.dot_dimension_numbers<[1], [0], [0], [1], [0, 0, 1, 1], [], []>} : vector<32x32xbf16>, vector<32x64xbf16>, vector<32x64xf32> -> vector<32x64xf32>
    %71 = vector.extract_strided_slice %9 {offsets = [1, 0], sizes = [1, 64], strides = [1, 1]} : vector<3x64xf32> to vector<1x64xf32>
    %72 = vector.broadcast %71 : vector<1x64xf32> to vector<32x64xf32>
    %73 = arith.addf %70, %72 : vector<32x64xf32>
    %74 = arith.truncf %73 : vector<32x64xf32> to vector<32x64xbf16>
    %cst_43 = arith.constant dense<0.000000e+00> : vector<32x32xf32>
    %75 = tpu.matmul %74, %40, %cst_43 {dimension_numbers = #tpu.dot_dimension_numbers<[1], [1], [0], [0], [0, 0, 1, 0], [], []>} : vector<32x64xbf16>, vector<32x64xbf16>, vector<32x32xf32> -> vector<32x32xf32>
    %76 = arith.addf %75, %0 : vector<32x32xf32>
    %cst_44 = arith.constant dense<0xFF800000> : vector<32xf32>
    %77 = vector.multi_reduction <maximumf>, %76, %cst_44 [1] : vector<32x32xf32> to vector<32xf32>
    %78 = vector.shape_cast %77 : vector<32xf32> to vector<32x1xf32>
    %79 = vector.broadcast %78 : vector<32x1xf32> to vector<32x32xf32>
    %80 = arith.subf %76, %79 : vector<32x32xf32>
    %81 = math.exp %80 : vector<32x32xf32>
    %cst_45 = arith.constant dense<0.000000e+00> : vector<32xf32>
    %82 = vector.multi_reduction <add>, %81, %cst_45 [1] : vector<32x32xf32> to vector<32xf32>
    %83 = vector.shape_cast %82 : vector<32xf32> to vector<32x1xf32>
    %84 = tpu.reciprocal %83 {approx = true} : vector<32x1xf32> -> vector<32x1xf32>
    %85 = vector.broadcast %84 : vector<32x1xf32> to vector<32x32xf32>
    %86 = arith.mulf %81, %85 : vector<32x32xf32>
    %87 = arith.truncf %86 : vector<32x32xf32> to vector<32x32xbf16>
    %cst_46 = arith.constant dense<0.000000e+00> : vector<32x64xf32>
    %88 = tpu.matmul %87, %40, %cst_46 {dimension_numbers = #tpu.dot_dimension_numbers<[1], [0], [0], [1], [0, 0, 1, 1], [], []>} : vector<32x32xbf16>, vector<32x64xbf16>, vector<32x64xf32> -> vector<32x64xf32>
    %89 = arith.truncf %88 : vector<32x64xf32> to vector<32x64xbf16>
    %c0_47 = arith.constant 0 : index
    %c1_48 = arith.constant 1 : index
    %c0_49 = arith.constant 0 : index
    %c0_50 = arith.constant 0 : index
    %90 = vector.load %arg7[%c0_47, %c1_48, %c0_49, %c0_50] : memref<2x2x64x32xbf16, #tpu.memory_space<vmem>>, vector<1x1x64x32xbf16>
    %91 = vector.shape_cast %90 : vector<1x1x64x32xbf16> to vector<64x32xbf16>
    %cst_51 = arith.constant dense<0.000000e+00> : vector<32x32xf32>
    %92 = tpu.matmul %89, %91, %cst_51 {dimension_numbers = #tpu.dot_dimension_numbers<[1], [0], [0], [1], [0, 0, 1, 1], [], []>} : vector<32x64xbf16>, vector<64x32xbf16>, vector<32x32xf32> -> vector<32x32xf32>
    %93 = arith.addf %67, %92 : vector<32x32xf32>
    %94 = arith.addf %31, %93 : vector<32x32xf32>
    %95 = vector.extract_strided_slice %7 {offsets = [4, 0], sizes = [1, 32], strides = [1, 1]} : vector<7x32xf32> to vector<1x32xf32>
    %96 = vector.broadcast %95 : vector<1x32xf32> to vector<32x32xf32>
    %97 = arith.addf %94, %96 : vector<32x32xf32>
    %98 = vector.extract_strided_slice %7 {offsets = [2, 0], sizes = [1, 32], strides = [1, 1]} : vector<7x32xf32> to vector<1x32xf32>
    %99 = vector.extract_strided_slice %7 {offsets = [3, 0], sizes = [1, 32], strides = [1, 1]} : vector<7x32xf32> to vector<1x32xf32>
    %cst_52 = arith.constant dense<0.000000e+00> : vector<32xf32>
    %100 = vector.multi_reduction <add>, %97, %cst_52 [1] : vector<32x32xf32> to vector<32xf32>
    %101 = vector.shape_cast %100 : vector<32xf32> to vector<32x1xf32>
    %cst_53 = arith.constant 3.200000e+01 : f32
    %102 = vector.broadcast %cst_53 : f32 to vector<32x1xf32>
    %103 = arith.divf %101, %102 : vector<32x1xf32>
    %104 = vector.broadcast %103 : vector<32x1xf32> to vector<32x32xf32>
    %105 = arith.subf %97, %104 : vector<32x32xf32>
    %106 = arith.mulf %105, %105 : vector<32x32xf32>
    %cst_54 = arith.constant dense<0.000000e+00> : vector<32xf32>
    %107 = vector.multi_reduction <add>, %106, %cst_54 [1] : vector<32x32xf32> to vector<32xf32>
    %108 = vector.shape_cast %107 : vector<32xf32> to vector<32x1xf32>
    %cst_55 = arith.constant 3.200000e+01 : f32
    %109 = vector.broadcast %cst_55 : f32 to vector<32x1xf32>
    %110 = arith.divf %108, %109 : vector<32x1xf32>
    %cst_56 = arith.constant 9.99999993E-9 : f32
    %111 = vector.broadcast %cst_56 : f32 to vector<32x1xf32>
    %112 = arith.addf %110, %111 : vector<32x1xf32>
    %113 = math.rsqrt %112 : vector<32x1xf32>
    %114 = vector.broadcast %113 : vector<32x1xf32> to vector<32x32xf32>
    %115 = arith.mulf %105, %114 : vector<32x32xf32>
    %116 = vector.broadcast %98 : vector<1x32xf32> to vector<32x32xf32>
    %117 = arith.mulf %115, %116 : vector<32x32xf32>
    %118 = vector.broadcast %99 : vector<1x32xf32> to vector<32x32xf32>
    %119 = arith.addf %117, %118 : vector<32x32xf32>
    %120 = arith.truncf %119 : vector<32x32xf32> to vector<32x32xbf16>
    %c0_57 = arith.constant 0 : index
    %c0_58 = arith.constant 0 : index
    %c0_59 = arith.constant 0 : index
    %c0_60 = arith.constant 0 : index
    %121 = vector.load %arg8[%c0_57, %c0_58, %c0_59, %c0_60] : memref<2x2x32x32xbf16, #tpu.memory_space<vmem>>, vector<1x1x32x32xbf16>
    %122 = vector.shape_cast %121 : vector<1x1x32x32xbf16> to vector<32x32xbf16>
    %cst_61 = arith.constant dense<0.000000e+00> : vector<32x32xf32>
    %123 = tpu.matmul %120, %122, %cst_61 {dimension_numbers = #tpu.dot_dimension_numbers<[1], [0], [0], [1], [0, 0, 1, 1], [], []>} : vector<32x32xbf16>, vector<32x32xbf16>, vector<32x32xf32> -> vector<32x32xf32>
    %124 = vector.extract_strided_slice %7 {offsets = [5, 0], sizes = [1, 32], strides = [1, 1]} : vector<7x32xf32> to vector<1x32xf32>
    %125 = vector.broadcast %124 : vector<1x32xf32> to vector<32x32xf32>
    %126 = arith.addf %123, %125 : vector<32x32xf32>
    %cst_62 = arith.constant 0.000000e+00 : f32
    %127 = vector.broadcast %cst_62 : f32 to vector<32x32xf32>
    %128 = arith.maximumf %126, %127 : vector<32x32xf32>
    %129 = arith.truncf %128 : vector<32x32xf32> to vector<32x32xbf16>
    %c0_63 = arith.constant 0 : index
    %c1_64 = arith.constant 1 : index
    %c0_65 = arith.constant 0 : index
    %c0_66 = arith.constant 0 : index
    %130 = vector.load %arg8[%c0_63, %c1_64, %c0_65, %c0_66] : memref<2x2x32x32xbf16, #tpu.memory_space<vmem>>, vector<1x1x32x32xbf16>
    %131 = vector.shape_cast %130 : vector<1x1x32x32xbf16> to vector<32x32xbf16>
    %cst_67 = arith.constant dense<0.000000e+00> : vector<32x32xf32>
    %132 = tpu.matmul %129, %131, %cst_67 {dimension_numbers = #tpu.dot_dimension_numbers<[1], [0], [0], [1], [0, 0, 1, 1], [], []>} : vector<32x32xbf16>, vector<32x32xbf16>, vector<32x32xf32> -> vector<32x32xf32>
    %133 = vector.extract_strided_slice %7 {offsets = [6, 0], sizes = [1, 32], strides = [1, 1]} : vector<7x32xf32> to vector<1x32xf32>
    %134 = vector.broadcast %133 : vector<1x32xf32> to vector<32x32xf32>
    %135 = arith.addf %132, %134 : vector<32x32xf32>
    %136 = arith.addf %135, %119 : vector<32x32xf32>
    %137 = vector.broadcast %5 : vector<32x1xf32> to vector<32x32xf32>
    %138 = arith.mulf %136, %137 : vector<32x32xf32>
    %c1_68 = arith.constant 1 : index
    %c0_69 = arith.constant 0 : index
    %c0_70 = arith.constant 0 : index
    %139 = vector.load %arg9[%c1_68, %c0_69, %c0_70] : memref<2x7x32xf32, #tpu.memory_space<vmem>>, vector<1x7x32xf32>
    %140 = vector.shape_cast %139 : vector<1x7x32xf32> to vector<7x32xf32>
    %c1_71 = arith.constant 1 : index
    %c0_72 = arith.constant 0 : index
    %c0_73 = arith.constant 0 : index
    %141 = vector.load %arg10[%c1_71, %c0_72, %c0_73] : memref<2x3x64xf32, #tpu.memory_space<vmem>>, vector<1x3x64xf32>
    %142 = vector.shape_cast %141 : vector<1x3x64xf32> to vector<3x64xf32>
    %143 = vector.extract_strided_slice %140 {offsets = [0, 0], sizes = [1, 32], strides = [1, 1]} : vector<7x32xf32> to vector<1x32xf32>
    %144 = vector.extract_strided_slice %140 {offsets = [1, 0], sizes = [1, 32], strides = [1, 1]} : vector<7x32xf32> to vector<1x32xf32>
    %cst_74 = arith.constant dense<0.000000e+00> : vector<32xf32>
    %145 = vector.multi_reduction <add>, %138, %cst_74 [1] : vector<32x32xf32> to vector<32xf32>
    %146 = vector.shape_cast %145 : vector<32xf32> to vector<32x1xf32>
    %cst_75 = arith.constant 3.200000e+01 : f32
    %147 = vector.broadcast %cst_75 : f32 to vector<32x1xf32>
    %148 = arith.divf %146, %147 : vector<32x1xf32>
    %149 = vector.broadcast %148 : vector<32x1xf32> to vector<32x32xf32>
    %150 = arith.subf %138, %149 : vector<32x32xf32>
    %151 = arith.mulf %150, %150 : vector<32x32xf32>
    %cst_76 = arith.constant dense<0.000000e+00> : vector<32xf32>
    %152 = vector.multi_reduction <add>, %151, %cst_76 [1] : vector<32x32xf32> to vector<32xf32>
    %153 = vector.shape_cast %152 : vector<32xf32> to vector<32x1xf32>
    %cst_77 = arith.constant 3.200000e+01 : f32
    %154 = vector.broadcast %cst_77 : f32 to vector<32x1xf32>
    %155 = arith.divf %153, %154 : vector<32x1xf32>
    %cst_78 = arith.constant 9.99999993E-9 : f32
    %156 = vector.broadcast %cst_78 : f32 to vector<32x1xf32>
    %157 = arith.addf %155, %156 : vector<32x1xf32>
    %158 = math.rsqrt %157 : vector<32x1xf32>
    %159 = vector.broadcast %158 : vector<32x1xf32> to vector<32x32xf32>
    %160 = arith.mulf %150, %159 : vector<32x32xf32>
    %161 = vector.broadcast %143 : vector<1x32xf32> to vector<32x32xf32>
    %162 = arith.mulf %160, %161 : vector<32x32xf32>
    %163 = vector.broadcast %144 : vector<1x32xf32> to vector<32x32xf32>
    %164 = arith.addf %162, %163 : vector<32x32xf32>
    %165 = arith.truncf %164 : vector<32x32xf32> to vector<32x32xbf16>
    %166 = arith.truncf %138 : vector<32x32xf32> to vector<32x32xbf16>
    %c1_79 = arith.constant 1 : index
    %c2_80 = arith.constant 2 : index
    %c0_81 = arith.constant 0 : index
    %c0_82 = arith.constant 0 : index
    %167 = vector.load %arg6[%c1_79, %c2_80, %c0_81, %c0_82] : memref<2x3x32x64xbf16, #tpu.memory_space<vmem>>, vector<1x1x32x64xbf16>
    %168 = vector.shape_cast %167 : vector<1x1x32x64xbf16> to vector<32x64xbf16>
    %cst_83 = arith.constant dense<0.000000e+00> : vector<32x64xf32>
    %169 = tpu.matmul %166, %168, %cst_83 {dimension_numbers = #tpu.dot_dimension_numbers<[1], [0], [0], [1], [0, 0, 1, 1], [], []>} : vector<32x32xbf16>, vector<32x64xbf16>, vector<32x64xf32> -> vector<32x64xf32>
    %170 = vector.extract_strided_slice %142 {offsets = [2, 0], sizes = [1, 64], strides = [1, 1]} : vector<3x64xf32> to vector<1x64xf32>
    %171 = vector.broadcast %170 : vector<1x64xf32> to vector<32x64xf32>
    %172 = arith.addf %169, %171 : vector<32x64xf32>
    %173 = arith.truncf %172 : vector<32x64xf32> to vector<32x64xbf16>
    %cst_84 = arith.constant 0.000000e+00 : f32
    %174 = vector.broadcast %cst_84 : f32 to vector<32x32xf32>
    %c1_85 = arith.constant 1 : index
    %c0_86 = arith.constant 0 : index
    %c0_87 = arith.constant 0 : index
    %c0_88 = arith.constant 0 : index
    %175 = vector.load %arg6[%c1_85, %c0_86, %c0_87, %c0_88] : memref<2x3x32x64xbf16, #tpu.memory_space<vmem>>, vector<1x1x32x64xbf16>
    %176 = vector.shape_cast %175 : vector<1x1x32x64xbf16> to vector<32x64xbf16>
    %cst_89 = arith.constant dense<0.000000e+00> : vector<32x64xf32>
    %177 = tpu.matmul %165, %176, %cst_89 {dimension_numbers = #tpu.dot_dimension_numbers<[1], [0], [0], [1], [0, 0, 1, 1], [], []>} : vector<32x32xbf16>, vector<32x64xbf16>, vector<32x64xf32> -> vector<32x64xf32>
    %178 = vector.extract_strided_slice %142 {offsets = [0, 0], sizes = [1, 64], strides = [1, 1]} : vector<3x64xf32> to vector<1x64xf32>
    %179 = vector.broadcast %178 : vector<1x64xf32> to vector<32x64xf32>
    %180 = arith.addf %177, %179 : vector<32x64xf32>
    %181 = arith.truncf %180 : vector<32x64xf32> to vector<32x64xbf16>
    %cst_90 = arith.constant dense<0.000000e+00> : vector<32x32xf32>
    %182 = tpu.matmul %181, %173, %cst_90 {dimension_numbers = #tpu.dot_dimension_numbers<[1], [1], [0], [0], [0, 0, 1, 0], [], []>} : vector<32x64xbf16>, vector<32x64xbf16>, vector<32x32xf32> -> vector<32x32xf32>
    %183 = arith.addf %182, %0 : vector<32x32xf32>
    %cst_91 = arith.constant dense<0xFF800000> : vector<32xf32>
    %184 = vector.multi_reduction <maximumf>, %183, %cst_91 [1] : vector<32x32xf32> to vector<32xf32>
    %185 = vector.shape_cast %184 : vector<32xf32> to vector<32x1xf32>
    %186 = vector.broadcast %185 : vector<32x1xf32> to vector<32x32xf32>
    %187 = arith.subf %183, %186 : vector<32x32xf32>
    %188 = math.exp %187 : vector<32x32xf32>
    %cst_92 = arith.constant dense<0.000000e+00> : vector<32xf32>
    %189 = vector.multi_reduction <add>, %188, %cst_92 [1] : vector<32x32xf32> to vector<32xf32>
    %190 = vector.shape_cast %189 : vector<32xf32> to vector<32x1xf32>
    %191 = tpu.reciprocal %190 {approx = true} : vector<32x1xf32> -> vector<32x1xf32>
    %192 = vector.broadcast %191 : vector<32x1xf32> to vector<32x32xf32>
    %193 = arith.mulf %188, %192 : vector<32x32xf32>
    %194 = arith.truncf %193 : vector<32x32xf32> to vector<32x32xbf16>
    %cst_93 = arith.constant dense<0.000000e+00> : vector<32x64xf32>
    %195 = tpu.matmul %194, %173, %cst_93 {dimension_numbers = #tpu.dot_dimension_numbers<[1], [0], [0], [1], [0, 0, 1, 1], [], []>} : vector<32x32xbf16>, vector<32x64xbf16>, vector<32x64xf32> -> vector<32x64xf32>
    %196 = arith.truncf %195 : vector<32x64xf32> to vector<32x64xbf16>
    %c1_94 = arith.constant 1 : index
    %c0_95 = arith.constant 0 : index
    %c0_96 = arith.constant 0 : index
    %c0_97 = arith.constant 0 : index
    %197 = vector.load %arg7[%c1_94, %c0_95, %c0_96, %c0_97] : memref<2x2x64x32xbf16, #tpu.memory_space<vmem>>, vector<1x1x64x32xbf16>
    %198 = vector.shape_cast %197 : vector<1x1x64x32xbf16> to vector<64x32xbf16>
    %cst_98 = arith.constant dense<0.000000e+00> : vector<32x32xf32>
    %199 = tpu.matmul %196, %198, %cst_98 {dimension_numbers = #tpu.dot_dimension_numbers<[1], [0], [0], [1], [0, 0, 1, 1], [], []>} : vector<32x64xbf16>, vector<64x32xbf16>, vector<32x32xf32> -> vector<32x32xf32>
    %200 = arith.addf %174, %199 : vector<32x32xf32>
    %c1_99 = arith.constant 1 : index
    %c1_100 = arith.constant 1 : index
    %c0_101 = arith.constant 0 : index
    %c0_102 = arith.constant 0 : index
    %201 = vector.load %arg6[%c1_99, %c1_100, %c0_101, %c0_102] : memref<2x3x32x64xbf16, #tpu.memory_space<vmem>>, vector<1x1x32x64xbf16>
    %202 = vector.shape_cast %201 : vector<1x1x32x64xbf16> to vector<32x64xbf16>
    %cst_103 = arith.constant dense<0.000000e+00> : vector<32x64xf32>
    %203 = tpu.matmul %165, %202, %cst_103 {dimension_numbers = #tpu.dot_dimension_numbers<[1], [0], [0], [1], [0, 0, 1, 1], [], []>} : vector<32x32xbf16>, vector<32x64xbf16>, vector<32x64xf32> -> vector<32x64xf32>
    %204 = vector.extract_strided_slice %142 {offsets = [1, 0], sizes = [1, 64], strides = [1, 1]} : vector<3x64xf32> to vector<1x64xf32>
    %205 = vector.broadcast %204 : vector<1x64xf32> to vector<32x64xf32>
    %206 = arith.addf %203, %205 : vector<32x64xf32>
    %207 = arith.truncf %206 : vector<32x64xf32> to vector<32x64xbf16>
    %cst_104 = arith.constant dense<0.000000e+00> : vector<32x32xf32>
    %208 = tpu.matmul %207, %173, %cst_104 {dimension_numbers = #tpu.dot_dimension_numbers<[1], [1], [0], [0], [0, 0, 1, 0], [], []>} : vector<32x64xbf16>, vector<32x64xbf16>, vector<32x32xf32> -> vector<32x32xf32>
    %209 = arith.addf %208, %0 : vector<32x32xf32>
    %cst_105 = arith.constant dense<0xFF800000> : vector<32xf32>
    %210 = vector.multi_reduction <maximumf>, %209, %cst_105 [1] : vector<32x32xf32> to vector<32xf32>
    %211 = vector.shape_cast %210 : vector<32xf32> to vector<32x1xf32>
    %212 = vector.broadcast %211 : vector<32x1xf32> to vector<32x32xf32>
    %213 = arith.subf %209, %212 : vector<32x32xf32>
    %214 = math.exp %213 : vector<32x32xf32>
    %cst_106 = arith.constant dense<0.000000e+00> : vector<32xf32>
    %215 = vector.multi_reduction <add>, %214, %cst_106 [1] : vector<32x32xf32> to vector<32xf32>
    %216 = vector.shape_cast %215 : vector<32xf32> to vector<32x1xf32>
    %217 = tpu.reciprocal %216 {approx = true} : vector<32x1xf32> -> vector<32x1xf32>
    %218 = vector.broadcast %217 : vector<32x1xf32> to vector<32x32xf32>
    %219 = arith.mulf %214, %218 : vector<32x32xf32>
    %220 = arith.truncf %219 : vector<32x32xf32> to vector<32x32xbf16>
    %cst_107 = arith.constant dense<0.000000e+00> : vector<32x64xf32>
    %221 = tpu.matmul %220, %173, %cst_107 {dimension_numbers = #tpu.dot_dimension_numbers<[1], [0], [0], [1], [0, 0, 1, 1], [], []>} : vector<32x32xbf16>, vector<32x64xbf16>, vector<32x64xf32> -> vector<32x64xf32>
    %222 = arith.truncf %221 : vector<32x64xf32> to vector<32x64xbf16>
    %c1_108 = arith.constant 1 : index
    %c1_109 = arith.constant 1 : index
    %c0_110 = arith.constant 0 : index
    %c0_111 = arith.constant 0 : index
    %223 = vector.load %arg7[%c1_108, %c1_109, %c0_110, %c0_111] : memref<2x2x64x32xbf16, #tpu.memory_space<vmem>>, vector<1x1x64x32xbf16>
    %224 = vector.shape_cast %223 : vector<1x1x64x32xbf16> to vector<64x32xbf16>
    %cst_112 = arith.constant dense<0.000000e+00> : vector<32x32xf32>
    %225 = tpu.matmul %222, %224, %cst_112 {dimension_numbers = #tpu.dot_dimension_numbers<[1], [0], [0], [1], [0, 0, 1, 1], [], []>} : vector<32x64xbf16>, vector<64x32xbf16>, vector<32x32xf32> -> vector<32x32xf32>
    %226 = arith.addf %200, %225 : vector<32x32xf32>
    %227 = arith.addf %164, %226 : vector<32x32xf32>
    %228 = vector.extract_strided_slice %140 {offsets = [4, 0], sizes = [1, 32], strides = [1, 1]} : vector<7x32xf32> to vector<1x32xf32>
    %229 = vector.broadcast %228 : vector<1x32xf32> to vector<32x32xf32>
    %230 = arith.addf %227, %229 : vector<32x32xf32>
    %231 = vector.extract_strided_slice %140 {offsets = [2, 0], sizes = [1, 32], strides = [1, 1]} : vector<7x32xf32> to vector<1x32xf32>
    %232 = vector.extract_strided_slice %140 {offsets = [3, 0], sizes = [1, 32], strides = [1, 1]} : vector<7x32xf32> to vector<1x32xf32>
    %cst_113 = arith.constant dense<0.000000e+00> : vector<32xf32>
    %233 = vector.multi_reduction <add>, %230, %cst_113 [1] : vector<32x32xf32> to vector<32xf32>
    %234 = vector.shape_cast %233 : vector<32xf32> to vector<32x1xf32>
    %cst_114 = arith.constant 3.200000e+01 : f32
    %235 = vector.broadcast %cst_114 : f32 to vector<32x1xf32>
    %236 = arith.divf %234, %235 : vector<32x1xf32>
    %237 = vector.broadcast %236 : vector<32x1xf32> to vector<32x32xf32>
    %238 = arith.subf %230, %237 : vector<32x32xf32>
    %239 = arith.mulf %238, %238 : vector<32x32xf32>
    %cst_115 = arith.constant dense<0.000000e+00> : vector<32xf32>
    %240 = vector.multi_reduction <add>, %239, %cst_115 [1] : vector<32x32xf32> to vector<32xf32>
    %241 = vector.shape_cast %240 : vector<32xf32> to vector<32x1xf32>
    %cst_116 = arith.constant 3.200000e+01 : f32
    %242 = vector.broadcast %cst_116 : f32 to vector<32x1xf32>
    %243 = arith.divf %241, %242 : vector<32x1xf32>
    %cst_117 = arith.constant 9.99999993E-9 : f32
    %244 = vector.broadcast %cst_117 : f32 to vector<32x1xf32>
    %245 = arith.addf %243, %244 : vector<32x1xf32>
    %246 = math.rsqrt %245 : vector<32x1xf32>
    %247 = vector.broadcast %246 : vector<32x1xf32> to vector<32x32xf32>
    %248 = arith.mulf %238, %247 : vector<32x32xf32>
    %249 = vector.broadcast %231 : vector<1x32xf32> to vector<32x32xf32>
    %250 = arith.mulf %248, %249 : vector<32x32xf32>
    %251 = vector.broadcast %232 : vector<1x32xf32> to vector<32x32xf32>
    %252 = arith.addf %250, %251 : vector<32x32xf32>
    %253 = arith.truncf %252 : vector<32x32xf32> to vector<32x32xbf16>
    %c1_118 = arith.constant 1 : index
    %c0_119 = arith.constant 0 : index
    %c0_120 = arith.constant 0 : index
    %c0_121 = arith.constant 0 : index
    %254 = vector.load %arg8[%c1_118, %c0_119, %c0_120, %c0_121] : memref<2x2x32x32xbf16, #tpu.memory_space<vmem>>, vector<1x1x32x32xbf16>
    %255 = vector.shape_cast %254 : vector<1x1x32x32xbf16> to vector<32x32xbf16>
    %cst_122 = arith.constant dense<0.000000e+00> : vector<32x32xf32>
    %256 = tpu.matmul %253, %255, %cst_122 {dimension_numbers = #tpu.dot_dimension_numbers<[1], [0], [0], [1], [0, 0, 1, 1], [], []>} : vector<32x32xbf16>, vector<32x32xbf16>, vector<32x32xf32> -> vector<32x32xf32>
    %257 = vector.extract_strided_slice %140 {offsets = [5, 0], sizes = [1, 32], strides = [1, 1]} : vector<7x32xf32> to vector<1x32xf32>
    %258 = vector.broadcast %257 : vector<1x32xf32> to vector<32x32xf32>
    %259 = arith.addf %256, %258 : vector<32x32xf32>
    %cst_123 = arith.constant 0.000000e+00 : f32
    %260 = vector.broadcast %cst_123 : f32 to vector<32x32xf32>
    %261 = arith.maximumf %259, %260 : vector<32x32xf32>
    %262 = arith.truncf %261 : vector<32x32xf32> to vector<32x32xbf16>
    %c1_124 = arith.constant 1 : index
    %c1_125 = arith.constant 1 : index
    %c0_126 = arith.constant 0 : index
    %c0_127 = arith.constant 0 : index
    %263 = vector.load %arg8[%c1_124, %c1_125, %c0_126, %c0_127] : memref<2x2x32x32xbf16, #tpu.memory_space<vmem>>, vector<1x1x32x32xbf16>
    %264 = vector.shape_cast %263 : vector<1x1x32x32xbf16> to vector<32x32xbf16>
    %cst_128 = arith.constant dense<0.000000e+00> : vector<32x32xf32>
    %265 = tpu.matmul %262, %264, %cst_128 {dimension_numbers = #tpu.dot_dimension_numbers<[1], [0], [0], [1], [0, 0, 1, 1], [], []>} : vector<32x32xbf16>, vector<32x32xbf16>, vector<32x32xf32> -> vector<32x32xf32>
    %266 = vector.extract_strided_slice %140 {offsets = [6, 0], sizes = [1, 32], strides = [1, 1]} : vector<7x32xf32> to vector<1x32xf32>
    %267 = vector.broadcast %266 : vector<1x32xf32> to vector<32x32xf32>
    %268 = arith.addf %265, %267 : vector<32x32xf32>
    %269 = arith.addf %268, %252 : vector<32x32xf32>
    %270 = vector.broadcast %5 : vector<32x1xf32> to vector<32x32xf32>
    %271 = arith.mulf %269, %270 : vector<32x32xf32>
    %cst_129 = arith.constant dense<0.000000e+00> : vector<32xf32>
    %272 = vector.multi_reduction <add>, %271, %cst_129 [1] : vector<32x32xf32> to vector<32xf32>
    %273 = vector.shape_cast %272 : vector<32xf32> to vector<32x1xf32>
    %cst_130 = arith.constant 3.200000e+01 : f32
    %274 = vector.broadcast %cst_130 : f32 to vector<32x1xf32>
    %275 = arith.divf %273, %274 : vector<32x1xf32>
    %276 = vector.broadcast %275 : vector<32x1xf32> to vector<32x32xf32>
    %277 = arith.subf %271, %276 : vector<32x32xf32>
    %278 = arith.mulf %277, %277 : vector<32x32xf32>
    %cst_131 = arith.constant dense<0.000000e+00> : vector<32xf32>
    %279 = vector.multi_reduction <add>, %278, %cst_131 [1] : vector<32x32xf32> to vector<32xf32>
    %280 = vector.shape_cast %279 : vector<32xf32> to vector<32x1xf32>
    %cst_132 = arith.constant 3.200000e+01 : f32
    %281 = vector.broadcast %cst_132 : f32 to vector<32x1xf32>
    %282 = arith.divf %280, %281 : vector<32x1xf32>
    %cst_133 = arith.constant 9.99999993E-9 : f32
    %283 = vector.broadcast %cst_133 : f32 to vector<32x1xf32>
    %284 = arith.addf %282, %283 : vector<32x1xf32>
    %285 = math.rsqrt %284 : vector<32x1xf32>
    %286 = vector.broadcast %285 : vector<32x1xf32> to vector<32x32xf32>
    %287 = arith.mulf %277, %286 : vector<32x32xf32>
    %288 = vector.broadcast %1 : vector<1x32xf32> to vector<32x32xf32>
    %289 = arith.mulf %287, %288 : vector<32x32xf32>
    %290 = vector.broadcast %2 : vector<1x32xf32> to vector<32x32xf32>
    %291 = arith.addf %289, %290 : vector<32x32xf32>
    %c0_134 = arith.constant 0 : index
    %c0_135 = arith.constant 0 : index
    %292 = vector.load %arg3[%c0_134, %c0_135] : memref<32x32xf32, #tpu.memory_space<vmem>>, vector<32x32xf32>
    %293 = arith.mulf %291, %292 : vector<32x32xf32>
    %294 = arith.truncf %293 : vector<32x32xf32> to vector<32x32xbf16>
    %cst_136 = arith.constant dense<0.000000e+00> : vector<1x32xf32>
    %295 = tpu.matmul %3, %294, %cst_136 {dimension_numbers = #tpu.dot_dimension_numbers<[1], [1], [0], [0], [0, 0, 1, 0], [], []>} : vector<1x32xbf16>, vector<32x32xbf16>, vector<1x32xf32> -> vector<1x32xf32>
    %c0_137 = arith.constant 0 : index
    %c0_138 = arith.constant 0 : index
    %296 = vector.load %arg4[%c0_137, %c0_138] : memref<32x32xf32, #tpu.memory_space<vmem>>, vector<32x32xf32>
    %297 = arith.mulf %291, %296 : vector<32x32xf32>
    %298 = arith.truncf %297 : vector<32x32xf32> to vector<32x32xbf16>
    %cst_139 = arith.constant dense<0.000000e+00> : vector<1x32xf32>
    %299 = tpu.matmul %3, %298, %cst_139 {dimension_numbers = #tpu.dot_dimension_numbers<[1], [1], [0], [0], [0, 0, 1, 0], [], []>} : vector<1x32xbf16>, vector<32x32xbf16>, vector<1x32xf32> -> vector<1x32xf32>
    %c0_140 = arith.constant 0 : index
    %c0_141 = arith.constant 0 : index
    %c0_142 = arith.constant 0 : index
    %300 = vector.load %arg12[%c0_140, %c0_141, %c0_142] : memref<1x2x32xf32, #tpu.memory_space<vmem>>, vector<1x1x32xf32>
    %301 = vector.shape_cast %300 : vector<1x1x32xf32> to vector<1x32xf32>
    %302 = vector.shape_cast %295 : vector<1x32xf32> to vector<1x1x32xf32>
    tpu.vector_store %arg12[%c0_140, %c0_141, %c0_142], %302 {strides = array<i32>} : memref<1x2x32xf32, #tpu.memory_space<vmem>>, vector<1x1x32xf32>,
    %c0_143 = arith.constant 0 : index
    %c1_144 = arith.constant 1 : index
    %c0_145 = arith.constant 0 : index
    %303 = vector.load %arg12[%c0_143, %c1_144, %c0_145] : memref<1x2x32xf32, #tpu.memory_space<vmem>>, vector<1x1x32xf32>
    %304 = vector.shape_cast %303 : vector<1x1x32xf32> to vector<1x32xf32>
    %305 = vector.shape_cast %299 : vector<1x32xf32> to vector<1x1x32xf32>
    tpu.vector_store %arg12[%c0_143, %c1_144, %c0_145], %305 {strides = array<i32>} : memref<1x2x32xf32, #tpu.memory_space<vmem>>, vector<1x1x32xf32>,
    return
  }
  func.func @transform_0(%arg0: i32) -> (i32, i32) {
    %c0_i32 = arith.constant 0 : i32
    %c0_i32_0 = arith.constant 0 : i32
    return %arg0, %c0_i32 : i32, i32
  }
  func.func @transform_1(%arg0: i32) -> (i32, i32) {
    %c0_i32 = arith.constant 0 : i32
    %c0_i32_0 = arith.constant 0 : i32
    return %arg0, %c0_i32 : i32, i32
  }
  func.func @transform_2(%arg0: i32) -> (i32, i32) {
    %c0_i32 = arith.constant 0 : i32
    %c0_i32_0 = arith.constant 0 : i32
    return %arg0, %c0_i32 : i32, i32
  }
  func.func @transform_3(%arg0: i32) -> (i32, i32) {
    %c0_i32 = arith.constant 0 : i32
    %c0_i32_0 = arith.constant 0 : i32
    return %arg0, %c0_i32 : i32, i32
  }
  func.func @transform_4(%arg0: i32) -> (i32, i32) {
    %c0_i32 = arith.constant 0 : i32
    %c0_i32_0 = arith.constant 0 : i32
    %c0_i32_1 = arith.constant 0 : i32
    return %c0_i32, %c0_i32_0 : i32, i32
  }
  func.func @transform_5(%arg0: i32) -> (i32, i32, i32, i32) {
    %c0_i32 = arith.constant 0 : i32
    %c0_i32_0 = arith.constant 0 : i32
    %c0_i32_1 = arith.constant 0 : i32
    %c0_i32_2 = arith.constant 0 : i32
    %c0_i32_3 = arith.constant 0 : i32
    return %c0_i32, %c0_i32_0, %c0_i32_1, %c0_i32_2 : i32, i32, i32, i32
  }
  func.func @transform_6(%arg0: i32) -> (i32, i32, i32, i32) {
    %c0_i32 = arith.constant 0 : i32
    %c0_i32_0 = arith.constant 0 : i32
    %c0_i32_1 = arith.constant 0 : i32
    %c0_i32_2 = arith.constant 0 : i32
    %c0_i32_3 = arith.constant 0 : i32
    return %c0_i32, %c0_i32_0, %c0_i32_1, %c0_i32_2 : i32, i32, i32, i32
  }
  func.func @transform_7(%arg0: i32) -> (i32, i32, i32, i32) {
    %c0_i32 = arith.constant 0 : i32
    %c0_i32_0 = arith.constant 0 : i32
    %c0_i32_1 = arith.constant 0 : i32
    %c0_i32_2 = arith.constant 0 : i32
    %c0_i32_3 = arith.constant 0 : i32
    return %c0_i32, %c0_i32_0, %c0_i32_1, %c0_i32_2 : i32, i32, i32, i32
  }
  func.func @transform_8(%arg0: i32) -> (i32, i32, i32) {
    %c0_i32 = arith.constant 0 : i32
    %c0_i32_0 = arith.constant 0 : i32
    %c0_i32_1 = arith.constant 0 : i32
    %c0_i32_2 = arith.constant 0 : i32
    return %c0_i32, %c0_i32_0, %c0_i32_1 : i32, i32, i32
  }
  func.func @transform_9(%arg0: i32) -> (i32, i32, i32) {
    %c0_i32 = arith.constant 0 : i32
    %c0_i32_0 = arith.constant 0 : i32
    %c0_i32_1 = arith.constant 0 : i32
    %c0_i32_2 = arith.constant 0 : i32
    return %c0_i32, %c0_i32_0, %c0_i32_1 : i32, i32, i32
  }
  func.func @transform_10(%arg0: i32) -> (i32, i32) {
    %c0_i32 = arith.constant 0 : i32
    %c0_i32_0 = arith.constant 0 : i32
    %c0_i32_1 = arith.constant 0 : i32
    return %c0_i32, %c0_i32_0 : i32, i32
  }
  func.func @transform_11(%arg0: i32) -> (i32, i32, i32) {
    %c0_i32 = arith.constant 0 : i32
    %c0_i32_0 = arith.constant 0 : i32
    %c0_i32_1 = arith.constant 0 : i32
    return %arg0, %c0_i32, %c0_i32_0 : i32, i32, i32
  }
}

</mosaic_0001>

<llo_original>
// kernel: squeeze.3
$region0: #{squeeze.3}
  %s0 = inlined_call_operand.vmem [shape: f32[256], index: 0, kind: input, shape index: {}]
  %s1 = inlined_call_operand.vmem [shape: f32[32,8], index: 1, kind: output, shape index: {}]
  $region1: #{squeeze.3} parent=0
    #allocation0 [shape = 'u8[4096]{0}', space=vmem, size = 0x1000, scoped, tag = 'scoped mem for input reshape']
    %s3 = ssub.s32 4, 1
    %v4 = vld [vmem:[%s0] sm:%s3]
    %5 = vst [vmem:[#allocation0] sm:%s3] %v4
    %v6 = vld [vmem:[#allocation0] sm:$0x3]
    %vm7 = vcmask 64512
    %8 = vst.msk [vmem:[%s1] ss:$16 sm:$0x3] %vm7, %v6
    %v9 = vld [vmem:[#allocation0] sm:$0x3]
    %10 = vrot.lane.b32.xlu0 %v9, 120
    %v11 = vpop.permute.xlu0 %10
    %vm12 = vcmask 64512
    %s13 = scalar_lea.vmem %s1, 1
    %14 = vst.msk [vmem:[%s13] ss:$16 sm:$0x3] %vm12, %v11
    %v15 = vld [vmem:[#allocation0] sm:$0x3]
    %16 = vrot.lane.b32.xlu0 %v15, 112
    %v17 = vpop.permute.xlu0 %16
    %vm18 = vcmask 64512
    %s19 = scalar_lea.vmem %s1, 2
    %20 = vst.msk [vmem:[%s19] ss:$16 sm:$0x3] %vm18, %v17
    %v21 = vld [vmem:[#allocation0] sm:$0x3]
    %22 = vrot.lane.b32.xlu0 %v21, 104
    %v23 = vpop.permute.xlu0 %22
    %vm24 = vcmask 64512
    %s25 = scalar_lea.vmem %s1, 3
    %26 = vst.msk [vmem:[%s25] ss:$16 sm:$0x3] %vm24, %v23
    %v27 = vld [vmem:[#allocation0] sm:$0x3]
    %28 = vrot.lane.b32.xlu0 %v27, 96
    %v29 = vpop.permute.xlu0 %28
    %vm30 = vcmask 64512
    %s31 = scalar_lea.vmem %s1, 4
    %32 = vst.msk [vmem:[%s31] ss:$16 sm:$0x3] %vm30, %v29
    %v33 = vld [vmem:[#allocation0] sm:$0x3]
    %34 = vrot.lane.b32.xlu0 %v33, 88
    %v35 = vpop.permute.xlu0 %34
    %vm36 = vcmask 64512
    %s37 = scalar_lea.vmem %s1, 5
    %38 = vst.msk [vmem:[%s37] ss:$16 sm:$0x3] %vm36, %v35
    %v39 = vld [vmem:[#allocation0] sm:$0x3]
    %40 = vrot.lane.b32.xlu0 %v39, 80
    %v41 = vpop.permute.xlu0 %40
    %vm42 = vcmask 64512
    %s43 = scalar_lea.vmem %s1, 6
    %44 = vst.msk [vmem:[%s43] ss:$16 sm:$0x3] %vm42, %v41
    %v45 = vld [vmem:[#allocation0] sm:$0x3]
    %46 = vrot.lane.b32.xlu0 %v45, 72
    %v47 = vpop.permute.xlu0 %46
    %vm48 = vcmask 64512
    %s49 = scalar_lea.vmem %s1, 7
    %50 = vst.msk [vmem:[%s49] ss:$16 sm:$0x3] %vm48, %v47
    %v51 = vld [vmem:[#allocation0] sm:$0x3]
    %52 = vrot.lane.b32.xlu0 %v51, 64
    %v53 = vpop.permute.xlu0 %52
    %vm54 = vcmask 64512
    %s55 = scalar_lea.vmem %s1, 8
    %56 = vst.msk [vmem:[%s55] ss:$16 sm:$0x3] %vm54, %v53
    %v57 = vld [vmem:[#allocation0] sm:$0x3]
    %58 = vrot.lane.b32.xlu0 %v57, 56
    %v59 = vpop.permute.xlu0 %58
    %vm60 = vcmask 64512
    %s61 = scalar_lea.vmem %s1, 9
    %62 = vst.msk [vmem:[%s61] ss:$16 sm:$0x3] %vm60, %v59
    %v63 = vld [vmem:[#allocation0] sm:$0x3]
    %64 = vrot.lane.b32.xlu0 %v63, 48
    %v65 = vpop.permute.xlu0 %64
    %vm66 = vcmask 64512
    %s67 = scalar_lea.vmem %s1, 10
    %68 = vst.msk [vmem:[%s67] ss:$16 sm:$0x3] %vm66, %v65
    %v69 = vld [vmem:[#allocation0] sm:$0x3]
    %70 = vrot.lane.b32.xlu0 %v69, 40
    %v71 = vpop.permute.xlu0 %70
    %vm72 = vcmask 64512
    %s73 = scalar_lea.vmem %s1, 11
    %74 = vst.msk [vmem:[%s73] ss:$16 sm:$0x3] %vm72, %v71
    %v75 = vld [vmem:[#allocation0] sm:$0x3]
    %76 = vrot.lane.b32.xlu0 %v75, 32
    %v77 = vpop.permute.xlu0 %76
    %vm78 = vcmask 64512
    %s79 = scalar_lea.vmem %s1, 12
    %80 = vst.msk [vmem:[%s79] ss:$16 sm:$0x3] %vm78, %v77
    %v81 = vld [vmem:[#allocation0] sm:$0x3]
    %82 = vrot.lane.b32.xlu0 %v81, 24
    %v83 = vpop.permute.xlu0 %82
    %vm84 = vcmask 64512
    %s85 = scalar_lea.vmem %s1, 13
    %86 = vst.msk [vmem:[%s85] ss:$16 sm:$0x3] %vm84, %v83
    %v87 = vld [vmem:[#allocation0] sm:$0x3]
    %88 = vrot.lane.b32.xlu0 %v87, 16
    %v89 = vpop.permute.xlu0 %88
    %vm90 = vcmask 64512
    %s91 = scalar_lea.vmem %s1, 14
    %92 = vst.msk [vmem:[%s91] ss:$16 sm:$0x3] %vm90, %v89
    %v93 = vld [vmem:[#allocation0] sm:$0x3]
    %94 = vrot.lane.b32.xlu0 %v93, 8
    %v95 = vpop.permute.xlu0 %94
    %vm96 = vcmask 64512
    %s97 = scalar_lea.vmem %s1, 15
    %98 = vst.msk [vmem:[%s97] ss:$16 sm:$0x3] %vm96, %v95

// kernel: squeeze.2
$region0: #{squeeze.2}
  %s0 = inlined_call_operand.vmem [shape: f32[8,32], index: 0, kind: input, shape index: {}]
  %s1 = inlined_call_operand.vmem [shape: f32[32,8], index: 1, kind: output, shape index: {}]
  %v2 = vld [vmem:[%s0] sm:$0xff]
  %vm3 = vcmask 64512
  %4 = vst.msk [vmem:[%s1] ss:$4 sm:$0xff] %vm3, %v2
  %v5 = vld [vmem:[%s0] sm:$0xff]
  %6 = vrot.lane.b32.xlu0 %v5, 120
  %v7 = vpop.permute.xlu0 %6
  %vm8 = vcmask 64512
  %s9 = scalar_lea.vmem %s1, 1
  %10 = vst.msk [vmem:[%s9] ss:$4 sm:$0xff] %vm8, %v7
  %v11 = vld [vmem:[%s0] sm:$0xff]
  %12 = vrot.lane.b32.xlu0 %v11, 112
  %v13 = vpop.permute.xlu0 %12
  %vm14 = vcmask 64512
  %s15 = scalar_lea.vmem %s1, 2
  %16 = vst.msk [vmem:[%s15] ss:$4 sm:$0xff] %vm14, %v13
  %v17 = vld [vmem:[%s0] sm:$0xff]
  %18 = vrot.lane.b32.xlu0 %v17, 104
  %v19 = vpop.permute.xlu0 %18
  %vm20 = vcmask 64512
  %s21 = scalar_lea.vmem %s1, 3
  %22 = vst.msk [vmem:[%s21] ss:$4 sm:$0xff] %vm20, %v19

// kernel: sasrec_forward.1
$region0: #{sasrec_forward.1}
  #allocation0 [shape = 'u32[]', space=smem, size = 0x4, offset = 0x4, fixed_abs, tag = 'smem constant byte address 0x4 - core index']
  #allocation1 [shape = 'u32[72,128]{1,0:T(1,128)}', space=vmem, size = 0x9000, scoped, tag = 'internal scratch']
  %s0 = inlined_call_operand.vmem [shape: f32[256,32], index: 0, kind: input, shape index: {}]
  %s1 = inlined_call_operand.vmem [shape: f32[256,1], index: 1, kind: input, shape index: {}]
  %s2 = inlined_call_operand.vmem [shape: f32[256,32], index: 2, kind: input, shape index: {}]
  %s3 = inlined_call_operand.vmem [shape: f32[256,32], index: 3, kind: input, shape index: {}]
  %s4 = inlined_call_operand.vmem [shape: f32[32,32], index: 4, kind: input, shape index: {}]
  %s5 = inlined_call_operand.vmem [shape: bf16[2,3,32,64], index: 5, kind: input, shape index: {}]
  %s6 = inlined_call_operand.vmem [shape: bf16[2,2,64,32], index: 6, kind: input, shape index: {}]
  %s7 = inlined_call_operand.vmem [shape: bf16[2,2,32,32], index: 7, kind: input, shape index: {}]
  %s8 = inlined_call_operand.vmem [shape: f32[2,7,32], index: 8, kind: input, shape index: {}]
  %s9 = inlined_call_operand.vmem [shape: f32[2,3,64], index: 9, kind: input, shape index: {}]
  %s10 = inlined_call_operand.vmem [shape: f32[2,32], index: 10, kind: input, shape index: {}]
  %s11 = inlined_call_operand.vmem [shape: f32[8,2,32], index: 11, kind: output, shape index: {}]
  %s12 = sld [smem:[#allocation0]]
  $region77: #{sasrec_forward.1} parent=0
    _
  %s14 = ssub.s32 1, %s12
  %s15 = scalar_select 0, %s14, %s12
  loop: start=0, step=1, limit=10
  $region2: #{sasrec_forward.1} parent=0 // loop_pre_header
    _
  $region3: #{sasrec_forward.1} parent=0 // loop_header
    %s17 = sphi 0, %s21
    %p18 = scmp.ge.s32.totalorder %s17, 10
    %s27 = sphi 0, %s29
    %s30 = sphi 0, %s27
    %s31 = sphi 0, %s30
    %s47 = sphi 0, %s31
    %s53 = sphi 0, %s55
    %s56 = sphi 0, %s53
    %s57 = sphi 0, %s56
    %s73 = sphi 0, %s57
    %s79 = sphi 0, %s81
    %s82 = sphi 0, %s79
    %s83 = sphi 0, %s82
    %s99 = sphi 0, %s83
    %s105 = sphi 0, %s107
    %s108 = sphi 0, %s105
    %s109 = sphi 0, %s108
    %s125 = sphi 0, %s109
    %s129 = sphi 0, %s129
    %s131 = sphi 0, %s129
    %s132 = sphi 0, %s131
    %s146 = sphi 0, %s132
    %s150 = sphi 0, %s150
    %s152 = sphi 0, %s150
    %s153 = sphi 0, %s152
    %s167 = sphi 0, %s153
    %s171 = sphi 0, %s171
    %s173 = sphi 0, %s171
    %s174 = sphi 0, %s173
    %s188 = sphi 0, %s174
    %s192 = sphi 0, %s192
    %s194 = sphi 0, %s192
    %s195 = sphi 0, %s194
    %s209 = sphi 0, %s195
    %s213 = sphi 0, %s213
    %s215 = sphi 0, %s213
    %s216 = sphi 0, %s215
    %s230 = sphi 0, %s216
    %s234 = sphi 0, %s234
    %s236 = sphi 0, %s234
    %s237 = sphi 0, %s236
    %s251 = sphi 0, %s237
    %s255 = sphi 0, %s255
    %s257 = sphi 0, %s255
    %s258 = sphi 0, %s257
    %s272 = sphi 0, %s258
    %s278 = sphi 0, %s280
    %s281 = sphi 0, %s278
    %s282 = sphi 0, %s281
    %s298 = sphi 0, %s282
  $region4: #{sasrec_forward.1} parent=0 // loop_header_branch
    %20 = sbr.rel (%p18) target = $region8
  $region5: #{sasrec_forward.1} parent=0 // loop_body
    %s22 = ssub.s32 %s17, 1
    %s23 = ssub.s32 %s17, 2
    %s24 = sadd.s32 %s17, 1
    %s25 = ssub.s32 %s17, %s24
    %p26 = scmp.eq.s32.totalorder %s25, 0
    %s28 = sadd.s32 %s27, 1
    %s29 = scalar_select %p26, %s27, %s28
    %p32 = pneg %p26
    %p33 = scmp.eq.s32.totalorder %s17, 7
    %p34 = por %p32, %p33
    %p35 = scmp.ne.s32.totalorder %s27, %s30
    %p36 = scmp.eq.s32.totalorder %s17, 0
    %p37 = por %p35, %p36
    %p38 = scmp.ne.s32.totalorder %s27, %s30
    %p39 = scmp.eq.s32.totalorder %s22, 7
    %p40 = por %p38, %p39
    %p41 = scmp.ne.s32.totalorder %s30, %s31
    %p42 = scmp.eq.s32.totalorder %s22, 0
    %p43 = por %p41, %p42
    %p44 = scmp.ne.s32.totalorder %s30, %s31
    %p45 = scmp.eq.s32.totalorder %s23, 7
    %p46 = por %p44, %p45
    %p48 = scmp.ne.s32.totalorder %s31, %s47
    %p49 = scmp.eq.s32.totalorder %s23, 0
    %p50 = por %p48, %p49
    %s51 = ssub.s32 %s17, %s24
    %p52 = scmp.eq.s32.totalorder %s51, 0
    %s54 = sadd.s32 %s53, 1
    %s55 = scalar_select %p52, %s53, %s54
    %p58 = pneg %p52
    %p59 = scmp.eq.s32.totalorder %s17, 7
    %p60 = por %p58, %p59
    %p61 = scmp.ne.s32.totalorder %s53, %s56
    %p62 = scmp.eq.s32.totalorder %s17, 0
    %p63 = por %p61, %p62
    %p64 = scmp.ne.s32.totalorder %s53, %s56
    %p65 = scmp.eq.s32.totalorder %s22, 7
    %p66 = por %p64, %p65
    %p67 = scmp.ne.s32.totalorder %s56, %s57
    %p68 = scmp.eq.s32.totalorder %s22, 0
    %p69 = por %p67, %p68
    %p70 = scmp.ne.s32.totalorder %s56, %s57
    %p71 = scmp.eq.s32.totalorder %s23, 7
    %p72 = por %p70, %p71
    %p74 = scmp.ne.s32.totalorder %s57, %s73
    %p75 = scmp.eq.s32.totalorder %s23, 0
    %p76 = por %p74, %p75
    %s77 = ssub.s32 %s17, %s24
    %p78 = scmp.eq.s32.totalorder %s77, 0
    %s80 = sadd.s32 %s79, 1
    %s81 = scalar_select %p78, %s79, %s80
    %p84 = pneg %p78
    %p85 = scmp.eq.s32.totalorder %s17, 7
    %p86 = por %p84, %p85
    %p87 = scmp.ne.s32.totalorder %s79, %s82
    %p88 = scmp.eq.s32.totalorder %s17, 0
    %p89 = por %p87, %p88
    %p90 = scmp.ne.s32.totalorder %s79, %s82
    %p91 = scmp.eq.s32.totalorder %s22, 7
    %p92 = por %p90, %p91
    %p93 = scmp.ne.s32.totalorder %s82, %s83
    %p94 = scmp.eq.s32.totalorder %s22, 0
    %p95 = por %p93, %p94
    %p96 = scmp.ne.s32.totalorder %s82, %s83
    %p97 = scmp.eq.s32.totalorder %s23, 7
    %p98 = por %p96, %p97
    %p100 = scmp.ne.s32.totalorder %s83, %s99
    %p101 = scmp.eq.s32.totalorder %s23, 0
    %p102 = por %p100, %p101
    %s103 = ssub.s32 %s17, %s24
    %p104 = scmp.eq.s32.totalorder %s103, 0
    %s106 = sadd.s32 %s105, 1
    %s107 = scalar_select %p104, %s105, %s106
    %p110 = pneg %p104
    %p111 = scmp.eq.s32.totalorder %s17, 7
    %p112 = por %p110, %p111
    %p113 = scmp.ne.s32.totalorder %s105, %s108
    %p114 = scmp.eq.s32.totalorder %s17, 0
    %p115 = por %p113, %p114
    %p116 = scmp.ne.s32.totalorder %s105, %s108
    %p117 = scmp.eq.s32.totalorder %s22, 7
    %p118 = por %p116, %p117
    %p119 = scmp.ne.s32.totalorder %s108, %s109
    %p120 = scmp.eq.s32.totalorder %s22, 0
    %p121 = por %p119, %p120
    %p122 = scmp.ne.s32.totalorder %s108, %s109
    %p123 = scmp.eq.s32.totalorder %s23, 7
    %p124 = por %p122, %p123
    %p126 = scmp.ne.s32.totalorder %s109, %s125
    %p127 = scmp.eq.s32.totalorder %s23, 0
    %p128 = por %p126, %p127
    %s130 = sadd.s32 %s129, 1
    %p133 = scmp.eq.s32.totalorder %s17, 7
    %p134 = scmp.ne.s32.totalorder %s129, %s131
    %p135 = scmp.eq.s32.totalorder %s17, 0
    %p136 = por %p134, %p135
    %p137 = scmp.ne.s32.totalorder %s129, %s131
    %p138 = scmp.eq.s32.totalorder %s22, 7
    %p139 = por %p137, %p138
    %p140 = scmp.ne.s32.totalorder %s131, %s132
    %p141 = scmp.eq.s32.totalorder %s22, 0
    %p142 = por %p140, %p141
    %p143 = scmp.ne.s32.totalorder %s131, %s132
    %p144 = scmp.eq.s32.totalorder %s23, 7
    %p145 = por %p143, %p144
    %p147 = scmp.ne.s32.totalorder %s132, %s146
    %p148 = scmp.eq.s32.totalorder %s23, 0
    %p149 = por %p147, %p148
    %s151 = sadd.s32 %s150, 1
    %p154 = scmp.eq.s32.totalorder %s17, 7
    %p155 = scmp.ne.s32.totalorder %s150, %s152
    %p156 = scmp.eq.s32.totalorder %s17, 0
    %p157 = por %p155, %p156
    %p158 = scmp.ne.s32.totalorder %s150, %s152
    %p159 = scmp.eq.s32.totalorder %s22, 7
    %p160 = por %p158, %p159
    %p161 = scmp.ne.s32.totalorder %s152, %s153
    %p162 = scmp.eq.s32.totalorder %s22, 0
    %p163 = por %p161, %p162
    %p164 = scmp.ne.s32.totalorder %s152, %s153
    %p165 = scmp.eq.s32.totalorder %s23, 7
    %p166 = por %p164, %p165
    %p168 = scmp.ne.s32.totalorder %s153, %s167
    %p169 = scmp.eq.s32.totalorder %s23, 0
    %p170 = por %p168, %p169
    %s172 = sadd.s32 %s171, 1
    %p175 = scmp.eq.s32.totalorder %s17, 7
    %p176 = scmp.ne.s32.totalorder %s171, %s173
    %p177 = scmp.eq.s32.totalorder %s17, 0
    %p178 = por %p176, %p177
    %p179 = scmp.ne.s32.totalorder %s171, %s173
    %p180 = scmp.eq.s32.totalorder %s22, 7
    %p181 = por %p179, %p180
    %p182 = scmp.ne.s32.totalorder %s173, %s174
    %p183 = scmp.eq.s32.totalorder %s22, 0
    %p184 = por %p182, %p183
    %p185 = scmp.ne.s32.totalorder %s173, %s174
    %p186 = scmp.eq.s32.totalorder %s23, 7
    %p187 = por %p185, %p186
    %p189 = scmp.ne.s32.totalorder %s174, %s188
    %p190 = scmp.eq.s32.totalorder %s23, 0
    %p191 = por %p189, %p190
    %s193 = sadd.s32 %s192, 1
    %p196 = scmp.eq.s32.totalorder %s17, 7
    %p197 = scmp.ne.s32.totalorder %s192, %s194
    %p198 = scmp.eq.s32.totalorder %s17, 0
    %p199 = por %p197, %p198
    %p200 = scmp.ne.s32.totalorder %s192, %s194
    %p201 = scmp.eq.s32.totalorder %s22, 7
    %p202 = por %p200, %p201
    %p203 = scmp.ne.s32.totalorder %s194, %s195
    %p204 = scmp.eq.s32.totalorder %s22, 0
    %p205 = por %p203, %p204
    %p206 = scmp.ne.s32.totalorder %s194, %s195
    %p207 = scmp.eq.s32.totalorder %s23, 7
    %p208 = por %p206, %p207
    %p210 = scmp.ne.s32.totalorder %s195, %s209
    %p211 = scmp.eq.s32.totalorder %s23, 0
    %p212 = por %p210, %p211
    %s214 = sadd.s32 %s213, 1
    %p217 = scmp.eq.s32.totalorder %s17, 7
    %p218 = scmp.ne.s32.totalorder %s213, %s215
    %p219 = scmp.eq.s32.totalorder %s17, 0
    %p220 = por %p218, %p219
    %p221 = scmp.ne.s32.totalorder %s213, %s215
    %p222 = scmp.eq.s32.totalorder %s22, 7
    %p223 = por %p221, %p222
    %p224 = scmp.ne.s32.totalorder %s215, %s216
    %p225 = scmp.eq.s32.totalorder %s22, 0
    %p226 = por %p224, %p225
    %p227 = scmp.ne.s32.totalorder %s215, %s216
    %p228 = scmp.eq.s32.totalorder %s23, 7
    %p229 = por %p227, %p228
    %p231 = scmp.ne.s32.totalorder %s216, %s230
    %p232 = scmp.eq.s32.totalorder %s23, 0
    %p233 = por %p231, %p232
    %s235 = sadd.s32 %s234, 1
    %p238 = scmp.eq.s32.totalorder %s17, 7
    %p239 = scmp.ne.s32.totalorder %s234, %s236
    %p240 = scmp.eq.s32.totalorder %s17, 0
    %p241 = por %p239, %p240
    %p242 = scmp.ne.s32.totalorder %s234, %s236
    %p243 = scmp.eq.s32.totalorder %s22, 7
    %p244 = por %p242, %p243
    %p245 = scmp.ne.s32.totalorder %s236, %s237
    %p246 = scmp.eq.s32.totalorder %s22, 0
    %p247 = por %p245, %p246
    %p248 = scmp.ne.s32.totalorder %s236, %s237
    %p249 = scmp.eq.s32.totalorder %s23, 7
    %p250 = por %p248, %p249
    %p252 = scmp.ne.s32.totalorder %s237, %s251
    %p253 = scmp.eq.s32.totalorder %s23, 0
    %p254 = por %p252, %p253
    %s256 = sadd.s32 %s255, 1
    %p259 = scmp.eq.s32.totalorder %s17, 7
    %p260 = scmp.ne.s32.totalorder %s255, %s257
    %p261 = scmp.eq.s32.totalorder %s17, 0
    %p262 = por %p260, %p261
    %p263 = scmp.ne.s32.totalorder %s255, %s257
    %p264 = scmp.eq.s32.totalorder %s22, 7
    %p265 = por %p263, %p264
    %p266 = scmp.ne.s32.totalorder %s257, %s258
    %p267 = scmp.eq.s32.totalorder %s22, 0
    %p268 = por %p266, %p267
    %p269 = scmp.ne.s32.totalorder %s257, %s258
    %p270 = scmp.eq.s32.totalorder %s23, 7
    %p271 = por %p269, %p270
    %p273 = scmp.ne.s32.totalorder %s258, %s272
    %p274 = scmp.eq.s32.totalorder %s23, 0
    %p275 = por %p273, %p274
    %s276 = ssub.s32 %s17, %s24
    %p277 = scmp.eq.s32.totalorder %s276, 0
    %s279 = sadd.s32 %s278, 1
    %s280 = scalar_select %p277, %s278, %s279
    %p283 = pneg %p277
    %p284 = scmp.eq.s32.totalorder %s17, 7
    %p285 = por %p283, %p284
    %p286 = scmp.ne.s32.totalorder %s278, %s281
    %p287 = scmp.eq.s32.totalorder %s17, 0
    %p288 = por %p286, %p287
    %p289 = scmp.ne.s32.totalorder %s278, %s281
    %p290 = scmp.eq.s32.totalorder %s22, 7
    %p291 = por %p289, %p290
    %p292 = scmp.ne.s32.totalorder %s281, %s282
    %p293 = scmp.eq.s32.totalorder %s22, 0
    %p294 = por %p292, %p293
    %p295 = scmp.ne.s32.totalorder %s281, %s282
    %p296 = scmp.eq.s32.totalorder %s23, 7
    %p297 = por %p295, %p296
    %p299 = scmp.ne.s32.totalorder %s282, %s298
    %p300 = scmp.eq.s32.totalorder %s23, 0
    %p301 = por %p299, %p300
    %p302 = scmp.le.s32.totalorder 1, %s17
    %p303 = scmp.lt.s32.totalorder %s17, 9
    %p304 = pnand %p302, %p303
    %p305 = pneg %p304
    // Predicated region
    $region9: #{sasrec_forward.1} parent=5 // pred_check
      _
    $region10: #{sasrec_forward.1} parent=5 // pred_check_branch
      %307 = sbr.rel (%p304) target = $region12
    $region11: #{sasrec_forward.1} parent=5 // pred_region
      %s308 = ssub.s32 %s17, 1
      // Predicated region
      $region13: #{sasrec_forward.1} parent=11 // pred_check
        %p309 = pneg %p142
      $region14: #{sasrec_forward.1} parent=11 // pred_check_branch
        %311 = sbr.rel (%p309) target = $region16
      $region15: #{sasrec_forward.1} parent=11 // pred_region
        _
      $region16: #{sasrec_forward.1} parent=11 // pred_fallthru
        _
      // Predicated region
      $region17: #{sasrec_forward.1} parent=11 // pred_check
        %p312 = pneg %p163
      $region18: #{sasrec_forward.1} parent=11 // pred_check_branch
        %314 = sbr.rel (%p312) target = $region20
      $region19: #{sasrec_forward.1} parent=11 // pred_region
        _
      $region20: #{sasrec_forward.1} parent=11 // pred_fallthru
        _
      // Predicated region
      $region21: #{sasrec_forward.1} parent=11 // pred_check
        %p315 = pneg %p184
      $region22: #{sasrec_forward.1} parent=11 // pred_check_branch
        %317 = sbr.rel (%p315) target = $region24
      $region23: #{sasrec_forward.1} parent=11 // pred_region
        _
      $region24: #{sasrec_forward.1} parent=11 // pred_fallthru
        _
      // Predicated region
      $region25: #{sasrec_forward.1} parent=11 // pred_check
        %p318 = pneg %p205
      $region26: #{sasrec_forward.1} parent=11 // pred_check_branch
        %320 = sbr.rel (%p318) target = $region28
      $region27: #{sasrec_forward.1} parent=11 // pred_region
        _
      $region28: #{sasrec_forward.1} parent=11 // pred_fallthru
        _
      // Predicated region
      $region29: #{sasrec_forward.1} parent=11 // pred_check
        %p321 = pneg %p226
      $region30: #{sasrec_forward.1} parent=11 // pred_check_branch
        %323 = sbr.rel (%p321) target = $region32
      $region31: #{sasrec_forward.1} parent=11 // pred_region
        _
      $region32: #{sasrec_forward.1} parent=11 // pred_fallthru
        _
      // Predicated region
      $region33: #{sasrec_forward.1} parent=11 // pred_check
        %p324 = pneg %p247
      $region34: #{sasrec_forward.1} parent=11 // pred_check_branch
        %326 = sbr.rel (%p324) target = $region36
      $region35: #{sasrec_forward.1} parent=11 // pred_region
        _
      $region36: #{sasrec_forward.1} parent=11 // pred_fallthru
        _
      // Predicated region
      $region37: #{sasrec_forward.1} parent=11 // pred_check
        %p327 = pneg %p268
      $region38: #{sasrec_forward.1} parent=11 // pred_check_branch
        %329 = sbr.rel (%p327) target = $region40
      $region39: #{sasrec_forward.1} parent=11 // pred_region
        _
      $region40: #{sasrec_forward.1} parent=11 // pred_fallthru
        _
    $region12: #{sasrec_forward.1} parent=5 // pred_fallthru
      _
    %p330 = scmp.lt.s32.totalorder %s17, 8
    // Predicated region
    $region41: #{sasrec_forward.1} parent=5 // pred_check
      %p331 = pneg %p330
    $region42: #{sasrec_forward.1} parent=5 // pred_check_branch
      %333 = sbr.rel (%p331) target = $region44
    $region43: #{sasrec_forward.1} parent=5 // pred_region
      // Predicated region
      $region45: #{sasrec_forward.1} parent=43 // pred_check
        %p334 = pneg %p37
      $region46: #{sasrec_forward.1} parent=43 // pred_check_branch
        %336 = sbr.rel (%p334) target = $region48
      $region47: #{sasrec_forward.1} parent=43 // pred_region
        %s337 = smul.u32 4, %s17
        %p338 = scmp.lt.s32.totalorder %s337, 31
        %s339 = scalar_select %p338, %s337, 31
        %s340 = smul.addr %s339, 8
        %s341 = scalar_lea.vmem %s0, %s340
        %s342 = smul.u32 4, %s17
      $region48: #{sasrec_forward.1} parent=43 // pred_fallthru
        _
      // Predicated region
      $region49: #{sasrec_forward.1} parent=43 // pred_check
        %p343 = pneg %p63
      $region50: #{sasrec_forward.1} parent=43 // pred_check_branch
        %345 = sbr.rel (%p343) target = $region52
      $region51: #{sasrec_forward.1} parent=43 // pred_region
        %s346 = smul.u32 4, %s17
        %p347 = scmp.lt.s32.totalorder %s346, 31
        %s348 = scalar_select %p347, %s346, 31
        %s349 = smul.addr %s348, 8
        %s350 = scalar_lea.vmem %s1, %s349
        %s351 = smul.u32 4, %s17
      $region52: #{sasrec_forward.1} parent=43 // pred_fallthru
        _
      // Predicated region
      $region53: #{sasrec_forward.1} parent=43 // pred_check
        %p352 = pneg %p89
      $region54: #{sasrec_forward.1} parent=43 // pred_check_branch
        %354 = sbr.rel (%p352) target = $region56
      $region55: #{sasrec_forward.1} parent=43 // pred_region
        %s355 = smul.u32 4, %s17
        %p356 = scmp.lt.s32.totalorder %s355, 31
        %s357 = scalar_select %p356, %s355, 31
        %s358 = smul.addr %s357, 8
        %s359 = scalar_lea.vmem %s2, %s358
        %s360 = smul.u32 4, %s17
      $region56: #{sasrec_forward.1} parent=43 // pred_fallthru
        _
      // Predicated region
      $region57: #{sasrec_forward.1} parent=43 // pred_check
        %p361 = pneg %p115
      $region58: #{sasrec_forward.1} parent=43 // pred_check_branch
        %363 = sbr.rel (%p361) target = $region60
      $region59: #{sasrec_forward.1} parent=43 // pred_region
        %s364 = smul.u32 4, %s17
        %p365 = scmp.lt.s32.totalorder %s364, 31
        %s366 = scalar_select %p365, %s364, 31
        %s367 = smul.addr %s366, 8
        %s368 = scalar_lea.vmem %s3, %s367
        %s369 = smul.u32 4, %s17
      $region60: #{sasrec_forward.1} parent=43 // pred_fallthru
        _
    $region44: #{sasrec_forward.1} parent=5 // pred_fallthru
      _
    %p370 = scmp.le.s32.totalorder 1, %s17
    %p371 = scmp.lt.s32.totalorder %s17, 9
    %p372 = pnand %p370, %p371
    %p373 = pneg %p372
    // Predicated region
    $region61: #{sasrec_forward.1} parent=5 // pred_check
      _
    $region62: #{sasrec_forward.1} parent=5 // pred_check_branch
      %375 = sbr.rel (%p372) target = $region64
    $region63: #{sasrec_forward.1} parent=5 // pred_region
      %s376 = ssub.s32 %s17, 1
      %s377 = smul.u32 4, %s22
      %p378 = scmp.lt.s32.totalorder %s377, 31
      %s379 = scalar_select %p378, %s377, 31
      %s380 = smul.addr %s379, 8
      %s381 = scalar_lea.vmem %s0, %s380
      %p382 = pneg %p43
      %p383 = pneg %p40
      %s384 = smul.u32 4, %s22
      %p385 = scmp.lt.s32.totalorder %s384, 31
      %s386 = scalar_select %p385, %s384, 31
      %s387 = smul.addr %s386, 8
      %s388 = scalar_lea.vmem %s1, %s387
      %p389 = pneg %p69
      %p390 = pneg %p66
      %s391 = smul.u32 4, %s22
      %p392 = scmp.lt.s32.totalorder %s391, 31
      %s393 = scalar_select %p392, %s391, 31
      %s394 = smul.addr %s393, 8
      %s395 = scalar_lea.vmem %s2, %s394
      %p396 = pneg %p95
      %p397 = pneg %p92
      %s398 = smul.u32 4, %s22
      %p399 = scmp.lt.s32.totalorder %s398, 31
      %s400 = scalar_select %p399, %s398, 31
      %s401 = smul.addr %s400, 8
      %s402 = scalar_lea.vmem %s3, %s401
      %p403 = pneg %p121
      %p404 = pneg %p118
      %p405 = pneg %p142
      %p406 = pneg %p139
      %p407 = pneg %p163
      %p408 = pneg %p160
      %p409 = pneg %p184
      %p410 = pneg %p181
      %p411 = pneg %p205
      %p412 = pneg %p202
      %p413 = pneg %p226
      %p414 = pneg %p223
      %p415 = pneg %p247
      %p416 = pneg %p244
      %p417 = pneg %p268
      %p418 = pneg %p265
      %p419 = pneg %p294
      %p420 = pneg %p291
      %p421 = scmp.lt.s32.totalorder %s22, 7
      %s422 = scalar_select %p421, %s22, 7
      %s423 = smul.addr %s422, 2
      %s424 = scalar_lea.vmem %s11, %s423
      %s425 = smul.u32 4, %s22
      %p426 = scmp.lt.s32.totalorder %s425, 31
      %s427 = scalar_select %p426, %s425, 31
      %s428 = smul.addr %s427, 8
      %s429 = scalar_lea.vmem %s0, %s428
      %s430 = smul.u32 4, %s22
      %s431 = smul.u32 4, %s22
      %p432 = scmp.lt.s32.totalorder %s431, 31
      %s433 = scalar_select %p432, %s431, 31
      %s434 = smul.addr %s433, 8
      %s435 = scalar_lea.vmem %s1, %s434
      %s436 = smul.u32 4, %s22
      %s437 = smul.u32 4, %s22
      %p438 = scmp.lt.s32.totalorder %s437, 31
      %s439 = scalar_select %p438, %s437, 31
      %s440 = smul.addr %s439, 8
      %s441 = scalar_lea.vmem %s2, %s440
      %s442 = smul.u32 4, %s22
      %s443 = smul.u32 4, %s22
      %p444 = scmp.lt.s32.totalorder %s443, 31
      %s445 = scalar_select %p444, %s443, 31
      %s446 = smul.addr %s445, 8
      %s447 = scalar_lea.vmem %s3, %s446
      %s448 = smul.u32 4, %s22
      %p449 = scmp.lt.s32.totalorder %s22, 7
      %s450 = scalar_select %p449, %s22, 7
      %s451 = smul.addr %s450, 2
      %s452 = scalar_lea.vmem %s11, %s451
      %v455 = vld [vmem:[%s4] sm:$0xff]
      %v456 = vld [vmem:[%s4 + $0x8] sm:$0xff]
      %v457 = vld [vmem:[%s4 + $0x10] sm:$0xff]
      %v458 = vld [vmem:[%s4 + $0x18] sm:$0xff]
      %v459 = vld [vmem:[%s10] sm:$0x1]
      %v460 = vld [vmem:[%s10 + $0x1] sm:$0x1]
      %v461 = vld [vmem:[%s429] sm:$0xff]
      %v462 = vld [vmem:[%s429 + $0x8] sm:$0xff]
      %v463 = vld [vmem:[%s429 + $0x10] sm:$0xff]
      %v464 = vld [vmem:[%s429 + $0x18] sm:$0xff]
      %v465 = vld [vmem:[%s435] sm:$0xff]
      %v466 = vld [vmem:[%s435 + $0x8] sm:$0xff]
      %v467 = vld [vmem:[%s435 + $0x10] sm:$0xff]
      %v468 = vld [vmem:[%s435 + $0x18] sm:$0xff]
      %v469 = vld [vmem:[%s8] sm:$0x7f]
      %v470 = vld [vmem:[%s9] sm:$0x7]
      %vm471 = vcmask 261120
      %v472 = vsel %vm471, %v461, 0.0
      %473 = vadd.xlane.f32.xlu0 %v472
      %v474 = vpop.xlane.xlu0 %473
      %v475 = vsel %vm471, %v462, 0.0
      %476 = vadd.xlane.f32.xlu0 %v475
      %v477 = vpop.xlane.xlu0 %476
      %v478 = vsel %vm471, %v463, 0.0
      %479 = vadd.xlane.f32.xlu0 %v478
      %v480 = vpop.xlane.xlu0 %479
      %v481 = vsel %vm471, %v464, 0.0
      %482 = vadd.xlane.f32.xlu0 %v481
      %v483 = vpop.xlane.xlu0 %482
      %v484 = vrcp.pop 32.0
      %v485 = vmul.f32 32.0, %v484
      %v486 = vsub.f32 1.0, %v485
      %v487 = vmul.f32 %v484, %v486
      %v488 = vadd.f32 %v484, %v487
      %vm489 = vweird.f32 %v484
      %v490 = vsel %vm489, %v484, %v488
      %v491 = vmul.f32 %v474, %v490
      %v492 = vmul.f32 %v477, %v490
      %v493 = vmul.f32 %v480, %v490
      %v494 = vmul.f32 %v483, %v490
      %v495 = vsub.f32 %v461, %v491
      %v496 = vsub.f32 %v462, %v492
      %v497 = vsub.f32 %v463, %v493
      %v498 = vsub.f32 %v464, %v494
      %v499 = vmul.f32 %v495, %v495
      %v500 = vmul.f32 %v496, %v496
      %v501 = vmul.f32 %v497, %v497
      %v502 = vmul.f32 %v498, %v498
      %v503 = vsel %vm471, %v499, 0.0
      %504 = vadd.xlane.f32.xlu0 %v503
      %v505 = vpop.xlane.xlu0 %504
      %v506 = vsel %vm471, %v500, 0.0
      %507 = vadd.xlane.f32.xlu0 %v506
      %v508 = vpop.xlane.xlu0 %507
      %v509 = vsel %vm471, %v501, 0.0
      %510 = vadd.xlane.f32.xlu0 %v509
      %v511 = vpop.xlane.xlu0 %510
      %v512 = vsel %vm471, %v502, 0.0
      %513 = vadd.xlane.f32.xlu0 %v512
      %v514 = vpop.xlane.xlu0 %513
      %v515 = vmul.f32 %v505, %v490
      %v516 = vmul.f32 %v508, %v490
      %v517 = vmul.f32 %v511, %v490
      %v518 = vmul.f32 %v514, %v490
      %v519 = vadd.f32 %v515, 1e-08
      %v520 = vadd.f32 %v516, 1e-08
      %v521 = vadd.f32 %v517, 1e-08
      %v522 = vadd.f32 %v518, 1e-08
      %v523 = vrsqrt.pop %v519
      %v524 = vmul.f32 %v523, %v519
      %v525 = vmul.f32 %v524, %v523
      %v526 = vmul.f32 0.5, %v525
      %v527 = vsub.f32 1.5, %v526
      %v528 = vmul.f32 %v523, %v527
      %vm529 = vweird.f32 %v519
      %vm530 = vweird.f32 %v523
      %vm531 = vmor %vm529, %vm530
      %v532 = vsel %vm531, %v523, %v528
      %v533 = vrsqrt.pop %v520
      %v534 = vmul.f32 %v533, %v520
      %v535 = vmul.f32 %v534, %v533
      %v536 = vmul.f32 0.5, %v535
      %v537 = vsub.f32 1.5, %v536
      %v538 = vmul.f32 %v533, %v537
      %vm539 = vweird.f32 %v520
      %vm540 = vweird.f32 %v533
      %vm541 = vmor %vm539, %vm540
      %v542 = vsel %vm541, %v533, %v538
      %v543 = vrsqrt.pop %v521
      %v544 = vmul.f32 %v543, %v521
      %v545 = vmul.f32 %v544, %v543
      %v546 = vmul.f32 0.5, %v545
      %v547 = vsub.f32 1.5, %v546
      %v548 = vmul.f32 %v543, %v547
      %vm549 = vweird.f32 %v521
      %vm550 = vweird.f32 %v543
      %vm551 = vmor %vm549, %vm550
      %v552 = vsel %vm551, %v543, %v548
      %v553 = vrsqrt.pop %v522
      %v554 = vmul.f32 %v553, %v522
      %v555 = vmul.f32 %v554, %v553
      %v556 = vmul.f32 0.5, %v555
      %v557 = vsub.f32 1.5, %v556
      %v558 = vmul.f32 %v553, %v557
      %vm559 = vweird.f32 %v522
      %vm560 = vweird.f32 %v553
      %vm561 = vmor %vm559, %vm560
      %v562 = vsel %vm561, %v553, %v558
      %v563 = vmul.f32 %v495, %v532
      %v564 = vmul.f32 %v496, %v542
      %v565 = vmul.f32 %v497, %v552
      %v566 = vmul.f32 %v498, %v562
      %v567 = vperm.slane %v469, 0
      %v568 = vmul.f32 %v563, %v567
      %v569 = vmul.f32 %v564, %v567
      %v570 = vmul.f32 %v565, %v567
      %v571 = vmul.f32 %v566, %v567
      %v572 = vperm.slane %v469, 1
      %v573 = vadd.f32 %v568, %v572
      %v574 = vadd.f32 %v569, %v572
      %v575 = vadd.f32 %v570, %v572
      %v576 = vadd.f32 %v571, %v572
      %v577 = vpack.c.bf16 %v574, %v573
      %v578 = vpack.c.bf16 %v576, %v575
      %v579 = vpack.c.bf16 %v462, %v461
      %v580 = vpack.c.bf16 %v464, %v463
      %s581 = scalar_lea.vmem %s5, 32
      %v582 = vld [vmem:[%s581] sm:$0xf]
      %v583 = vld [vmem:[%s581 + $0x4] sm:$0xf]
      %v584 = vld [vmem:[%s581 + $0x8] sm:$0xf]
      %v585 = vld [vmem:[%s581 + $0xc] sm:$0xf]
      %v586 = vperm.slane %v470, 2
      %v591 = vunpack.c.l.b16 %v582
      %v592 = vunpack.c.l.b16 %v583
      %v593 = vunpack.c.l.b16 %v584
      %v594 = vunpack.c.l.b16 %v585
      %v595 = vpack.c.b16 %v592, %v591
      %v596 = vpack.c.b16 %v594, %v593
      %v600 = vsel %vm471, %v579, 0
      %v603 = vsel %vm471, %v580, 0
      %605 = vmatpush.bf16.msra.mxu0 0
      %606 = vmatpush.bf16.msra.mxu0 0
      %607 = vmatpush.bf16.msra.mxu0 0
      %608 = vmatpush.bf16.msra.mxu0 0
      %609 = vmatpush.bf16.msra.mxu0 0
      %610 = vmatpush.bf16.msra.mxu0 0
      %611 = vmatpush.bf16.msra.mxu0 %v596
      %612 = vmatpush.bf16.msra.mxu0 %v595
      %613 = vmatmul.bf16.gmra.mxu0 %v600
      %v614 = vpop.f32.mrf.mxu0
      %v615 = vadd.f32 %v586, %v614
      %v616 = vpop.f32.mrf.mxu0
      %v617 = vadd.f32 %v586, %v616
      %618 = vmatmul.bf16.gmra.mxu0 %v603
      %v619 = vpop.f32.mrf.mxu0
      %v620 = vadd.f32 %v586, %v619
      %v621 = vpop.f32.mrf.mxu0
      %v622 = vadd.f32 %v586, %v621
      %623 = vdwg.mxu0
      %v624 = vpack.c.bf16 %v617, %v615
      %v625 = vpack.c.bf16 %v622, %v620
      %v626 = vld [vmem:[%s5] sm:$0xf]
      %v627 = vld [vmem:[%s5 + $0x4] sm:$0xf]
      %v628 = vld [vmem:[%s5 + $0x8] sm:$0xf]
      %v629 = vld [vmem:[%s5 + $0xc] sm:$0xf]
      %v630 = vperm.slane %v470, 0
      %v635 = vunpack.c.l.b16 %v626
      %v636 = vunpack.c.l.b16 %v627
      %v637 = vunpack.c.l.b16 %v628
      %v638 = vunpack.c.l.b16 %v629
      %v639 = vpack.c.b16 %v636, %v635
      %v640 = vpack.c.b16 %v638, %v637
      %v644 = vsel %vm471, %v577, 0
      %v647 = vsel %vm471, %v578, 0
      %649 = vmatpush.bf16.msra.mxu0 0
      %650 = vmatpush.bf16.msra.mxu0 0
      %651 = vmatpush.bf16.msra.mxu0 0
      %652 = vmatpush.bf16.msra.mxu0 0
      %653 = vmatpush.bf16.msra.mxu0 0
      %654 = vmatpush.bf16.msra.mxu0 0
      %655 = vmatpush.bf16.msra.mxu0 %v640
      %656 = vmatpush.bf16.msra.mxu0 %v639
      %657 = vmatmul.bf16.gmra.mxu0 %v644
      %v658 = vpop.f32.mrf.mxu0
      %v659 = vadd.f32 %v630, %v658
      %v660 = vpop.f32.mrf.mxu0
      %v661 = vadd.f32 %v630, %v660
      %662 = vmatmul.bf16.gmra.mxu0 %v647
      %v663 = vpop.f32.mrf.mxu0
      %v664 = vadd.f32 %v630, %v663
      %v665 = vpop.f32.mrf.mxu0
      %v666 = vadd.f32 %v630, %v665
      %667 = vdwg.mxu0
      %v668 = vpack.c.bf16 %v661, %v659
      %v669 = vpack.c.bf16 %v666, %v664
      %vm670 = vcmask 523264
      %v672 = vsel %vm670, %v668, 0
      %v675 = vsel %vm670, %v669, 0
      %v678 = vsel %vm670, %v624, 0
      %v681 = vsel %vm670, %v625, 0
      %683 = vmatpush.bf16.xpose.msra.mxu0 0
      %684 = vmatpush.bf16.xpose.msra.mxu0 0
      %685 = vmatpush.bf16.xpose.msra.mxu0 0
      %686 = vmatpush.bf16.xpose.msra.mxu0 0
      %687 = vmatpush.bf16.xpose.msra.mxu0 0
      %688 = vmatpush.bf16.xpose.msra.mxu0 0
      %689 = vmatpush.bf16.xpose.msra.mxu0 %v681
      %690 = vmatpush.bf16.xpose.msra.mxu0 %v678
      %691 = vmatmul.bf16.gmra.mxu0 %v672
      %v692 = vpop.f32.mrf.mxu0
      %v693 = vadd.f32 %v455, %v692
      %v694 = vpop.f32.mrf.mxu0
      %v695 = vadd.f32 %v456, %v694
      %696 = vmatmul.bf16.gmra.mxu0 %v675
      %v697 = vpop.f32.mrf.mxu0
      %v698 = vadd.f32 %v457, %v697
      %v699 = vpop.f32.mrf.mxu0
      %v700 = vadd.f32 %v458, %v699
      %701 = vdwg.mxu0
      %v702 = vsel %vm471, %v693, -inf
      %703 = vmax.xlane.f32.xlu0 %v702
      %v704 = vpop.xlane.xlu0 %703
      %v705 = vsel %vm471, %v695, -inf
      %706 = vmax.xlane.f32.xlu0 %v705
      %v707 = vpop.xlane.xlu0 %706
      %v708 = vsel %vm471, %v698, -inf
      %709 = vmax.xlane.f32.xlu0 %v708
      %v710 = vpop.xlane.xlu0 %709
      %v711 = vsel %vm471, %v700, -inf
      %712 = vmax.xlane.f32.xlu0 %v711
      %v713 = vpop.xlane.xlu0 %712
      %v714 = vsub.f32 %v693, %v704
      %v715 = vsub.f32 %v695, %v707
      %v716 = vsub.f32 %v698, %v710
      %v717 = vsub.f32 %v700, %v713
      %v718 = vmul.f32 %v714, 1.442695
      %v719 = vpow.pop %v718
      %v720 = vmul.f32 %v715, 1.442695
      %v721 = vpow.pop %v720
      %v722 = vmul.f32 %v716, 1.442695
      %v723 = vpow.pop %v722
      %v724 = vmul.f32 %v717, 1.442695
      %v725 = vpow.pop %v724
      %v726 = vsel %vm471, %v719, 0.0
      %727 = vadd.xlane.f32.xlu0 %v726
      %v728 = vpop.xlane.xlu0 %727
      %v729 = vsel %vm471, %v721, 0.0
      %730 = vadd.xlane.f32.xlu0 %v729
      %v731 = vpop.xlane.xlu0 %730
      %v732 = vsel %vm471, %v723, 0.0
      %733 = vadd.xlane.f32.xlu0 %v732
      %v734 = vpop.xlane.xlu0 %733
      %v735 = vsel %vm471, %v725, 0.0
      %736 = vadd.xlane.f32.xlu0 %v735
      %v737 = vpop.xlane.xlu0 %736
      %v738 = vrcp.pop %v728
      %v739 = vrcp.pop %v731
      %v740 = vrcp.pop %v734
      %v741 = vrcp.pop %v737
      %v742 = vmul.f32 %v719, %v738
      %v743 = vmul.f32 %v721, %v739
      %v744 = vmul.f32 %v723, %v740
      %v745 = vmul.f32 %v725, %v741
      %v746 = vpack.c.bf16 %v743, %v742
      %v747 = vpack.c.bf16 %v745, %v744
      %v749 = vsel %vm471, %v746, 0
      %v752 = vsel %vm471, %v747, 0
      %754 = vmatpush.bf16.msra.mxu0 0
      %755 = vmatpush.bf16.msra.mxu0 0
      %756 = vmatpush.bf16.msra.mxu0 0
      %757 = vmatpush.bf16.msra.mxu0 0
      %758 = vmatpush.bf16.msra.mxu0 0
      %759 = vmatpush.bf16.msra.mxu0 0
      %760 = vmatpush.bf16.msra.mxu0 %v625
      %761 = vmatpush.bf16.msra.mxu0 %v624
      %762 = vmatmul.bf16.gmra.mxu0 %v749
      %v763 = vpop.f32.mrf.mxu0
      %v764 = vadd.f32 0.0, %v763
      %v765 = vpop.f32.mrf.mxu0
      %v766 = vadd.f32 0.0, %v765
      %767 = vmatmul.bf16.gmra.mxu0 %v752
      %v768 = vpop.f32.mrf.mxu0
      %v769 = vadd.f32 0.0, %v768
      %v770 = vpop.f32.mrf.mxu0
      %v771 = vadd.f32 0.0, %v770
      %772 = vdwg.mxu0
      %v773 = vpack.c.bf16 %v766, %v764
      %v774 = vpack.c.bf16 %v771, %v769
      %v775 = vld [vmem:[%s6] sm:$0xf]
      %v776 = vld [vmem:[%s6 + $0x4] sm:$0xf]
      %v777 = vld [vmem:[%s6 + $0x8] sm:$0xf]
      %v778 = vld [vmem:[%s6 + $0xc] sm:$0xf]
      %v779 = vld [vmem:[%s6 + $0x10] sm:$0xf]
      %v780 = vld [vmem:[%s6 + $0x14] sm:$0xf]
      %v781 = vld [vmem:[%s6 + $0x18] sm:$0xf]
      %v782 = vld [vmem:[%s6 + $0x1c] sm:$0xf]
      %s783 = scalar_lea.vmem %s5, 16
      %v784 = vld [vmem:[%s783] sm:$0xf]
      %v785 = vld [vmem:[%s783 + $0x4] sm:$0xf]
      %v786 = vld [vmem:[%s783 + $0x8] sm:$0xf]
      %v787 = vld [vmem:[%s783 + $0xc] sm:$0xf]
      %v788 = vperm.slane %v470, 1
      %v793 = vunpack.c.l.b16 %v784
      %v794 = vunpack.c.l.b16 %v785
      %v795 = vunpack.c.l.b16 %v786
      %v796 = vunpack.c.l.b16 %v787
      %v797 = vpack.c.b16 %v794, %v793
      %v798 = vpack.c.b16 %v796, %v795
      %801 = vmatpush.bf16.msra.mxu0 0
      %802 = vmatpush.bf16.msra.mxu0 0
      %803 = vmatpush.bf16.msra.mxu0 0
      %804 = vmatpush.bf16.msra.mxu0 0
      %805 = vmatpush.bf16.msra.mxu0 0
      %806 = vmatpush.bf16.msra.mxu0 0
      %807 = vmatpush.bf16.msra.mxu0 %v798
      %808 = vmatpush.bf16.msra.mxu0 %v797
      %809 = vmatmul.bf16.gmra.mxu0 %v644
      %v810 = vpop.f32.mrf.mxu0
      %v811 = vadd.f32 %v788, %v810
      %v812 = vpop.f32.mrf.mxu0
      %v813 = vadd.f32 %v788, %v812
      %814 = vmatmul.bf16.gmra.mxu0 %v647
      %v815 = vpop.f32.mrf.mxu0
      %v816 = vadd.f32 %v788, %v815
      %v817 = vpop.f32.mrf.mxu0
      %v818 = vadd.f32 %v788, %v817
      %819 = vdwg.mxu0
      %v820 = vpack.c.bf16 %v813, %v811
      %v821 = vpack.c.bf16 %v818, %v816
      %v823 = vsel %vm670, %v820, 0
      %v826 = vsel %vm670, %v821, 0
      %828 = vmatpush.bf16.xpose.msra.mxu0 0
      %829 = vmatpush.bf16.xpose.msra.mxu0 0
      %830 = vmatpush.bf16.xpose.msra.mxu0 0
      %831 = vmatpush.bf16.xpose.msra.mxu0 0
      %832 = vmatpush.bf16.xpose.msra.mxu0 0
      %833 = vmatpush.bf16.xpose.msra.mxu0 0
      %834 = vmatpush.bf16.xpose.msra.mxu0 %v681
      %835 = vmatpush.bf16.xpose.msra.mxu0 %v678
      %836 = vmatmul.bf16.gmra.mxu0 %v823
      %v837 = vpop.f32.mrf.mxu0
      %v838 = vadd.f32 %v455, %v837
      %v839 = vpop.f32.mrf.mxu0
      %v840 = vadd.f32 %v456, %v839
      %841 = vmatmul.bf16.gmra.mxu0 %v826
      %v842 = vpop.f32.mrf.mxu0
      %v843 = vadd.f32 %v457, %v842
      %v844 = vpop.f32.mrf.mxu0
      %v845 = vadd.f32 %v458, %v844
      %846 = vdwg.mxu0
      %v847 = vsel %vm471, %v838, -inf
      %848 = vmax.xlane.f32.xlu0 %v847
      %v849 = vpop.xlane.xlu0 %848
      %v850 = vsel %vm471, %v840, -inf
      %851 = vmax.xlane.f32.xlu0 %v850
      %v852 = vpop.xlane.xlu0 %851
      %v853 = vsel %vm471, %v843, -inf
      %854 = vmax.xlane.f32.xlu0 %v853
      %v855 = vpop.xlane.xlu0 %854
      %v856 = vsel %vm471, %v845, -inf
      %857 = vmax.xlane.f32.xlu0 %v856
      %v858 = vpop.xlane.xlu0 %857
      %v859 = vsub.f32 %v838, %v849
      %v860 = vsub.f32 %v840, %v852
      %v861 = vsub.f32 %v843, %v855
      %v862 = vsub.f32 %v845, %v858
      %v863 = vmul.f32 %v859, 1.442695
      %v864 = vpow.pop %v863
      %v865 = vmul.f32 %v860, 1.442695
      %v866 = vpow.pop %v865
      %v867 = vmul.f32 %v861, 1.442695
      %v868 = vpow.pop %v867
      %v869 = vmul.f32 %v862, 1.442695
      %v870 = vpow.pop %v869
      %v871 = vsel %vm471, %v864, 0.0
      %872 = vadd.xlane.f32.xlu0 %v871
      %v873 = vpop.xlane.xlu0 %872
      %v874 = vsel %vm471, %v866, 0.0
      %875 = vadd.xlane.f32.xlu0 %v874
      %v876 = vpop.xlane.xlu0 %875
      %v877 = vsel %vm471, %v868, 0.0
      %878 = vadd.xlane.f32.xlu0 %v877
      %v879 = vpop.xlane.xlu0 %878
      %v880 = vsel %vm471, %v870, 0.0
      %881 = vadd.xlane.f32.xlu0 %v880
      %v882 = vpop.xlane.xlu0 %881
      %v883 = vrcp.pop %v873
      %v884 = vrcp.pop %v876
      %v885 = vrcp.pop %v879
      %v886 = vrcp.pop %v882
      %v887 = vmul.f32 %v864, %v883
      %v888 = vmul.f32 %v866, %v884
      %v889 = vmul.f32 %v868, %v885
      %v890 = vmul.f32 %v870, %v886
      %v891 = vpack.c.bf16 %v888, %v887
      %v892 = vpack.c.bf16 %v890, %v889
      %v894 = vsel %vm471, %v891, 0
      %v897 = vsel %vm471, %v892, 0
      %899 = vmatpush.bf16.msra.mxu0 0
      %900 = vmatpush.bf16.msra.mxu0 0
      %901 = vmatpush.bf16.msra.mxu0 0
      %902 = vmatpush.bf16.msra.mxu0 0
      %903 = vmatpush.bf16.msra.mxu0 0
      %904 = vmatpush.bf16.msra.mxu0 0
      %905 = vmatpush.bf16.msra.mxu0 %v625
      %906 = vmatpush.bf16.msra.mxu0 %v624
      %907 = vmatmul.bf16.gmra.mxu0 %v894
      %v908 = vpop.f32.mrf.mxu0
      %v909 = vadd.f32 0.0, %v908
      %v910 = vpop.f32.mrf.mxu0
      %v911 = vadd.f32 0.0, %v910
      %912 = vmatmul.bf16.gmra.mxu0 %v897
      %v913 = vpop.f32.mrf.mxu0
      %v914 = vadd.f32 0.0, %v913
      %v915 = vpop.f32.mrf.mxu0
      %v916 = vadd.f32 0.0, %v915
      %917 = vdwg.mxu0
      %v918 = vpack.c.bf16 %v911, %v909
      %v919 = vpack.c.bf16 %v916, %v914
      %s920 = scalar_lea.vmem %s6, 32
      %v921 = vld [vmem:[%s920] sm:$0xf]
      %v922 = vld [vmem:[%s920 + $0x4] sm:$0xf]
      %v923 = vld [vmem:[%s920 + $0x8] sm:$0xf]
      %v924 = vld [vmem:[%s920 + $0xc] sm:$0xf]
      %v925 = vld [vmem:[%s920 + $0x10] sm:$0xf]
      %v926 = vld [vmem:[%s920 + $0x14] sm:$0xf]
      %v927 = vld [vmem:[%s920 + $0x18] sm:$0xf]
      %v928 = vld [vmem:[%s920 + $0x1c] sm:$0xf]
      %v937 = vunpack.c.l.b16 %v921
      %v938 = vunpack.c.l.b16 %v922
      %v939 = vunpack.c.l.b16 %v923
      %v940 = vunpack.c.l.b16 %v924
      %v941 = vunpack.c.l.b16 %v925
      %v942 = vunpack.c.l.b16 %v926
      %v943 = vunpack.c.l.b16 %v927
      %v944 = vunpack.c.l.b16 %v928
      %v945 = vpack.c.b16 %v938, %v937
      %v946 = vpack.c.b16 %v940, %v939
      %v947 = vpack.c.b16 %v942, %v941
      %v948 = vpack.c.b16 %v944, %v943
      %v954 = vsel %vm670, %v918, 0
      %v957 = vsel %vm670, %v919, 0
      %959 = vmatpush.bf16.msra.mxu0 0
      %960 = vmatpush.bf16.msra.mxu0 0
      %961 = vmatpush.bf16.msra.mxu0 0
      %962 = vmatpush.bf16.msra.mxu0 0
      %963 = vmatpush.bf16.msra.mxu0 %v948
      %964 = vmatpush.bf16.msra.mxu0 %v947
      %965 = vmatpush.bf16.msra.mxu0 %v946
      %966 = vmatpush.bf16.msra.mxu0 %v945
      %967 = vmatmul.bf16.gmra.mxu0 %v954
      %v968 = vpop.f32.mrf.mxu0
      %v969 = vadd.f32 0.0, %v968
      %v970 = vpop.f32.mrf.mxu0
      %v971 = vadd.f32 0.0, %v970
      %972 = vmatmul.bf16.gmra.mxu0 %v957
      %v973 = vpop.f32.mrf.mxu0
      %v974 = vadd.f32 0.0, %v973
      %v975 = vpop.f32.mrf.mxu0
      %v976 = vadd.f32 0.0, %v975
      %977 = vdwg.mxu0
      %v986 = vunpack.c.l.b16 %v775
      %v987 = vunpack.c.l.b16 %v776
      %v988 = vunpack.c.l.b16 %v777
      %v989 = vunpack.c.l.b16 %v778
      %v990 = vunpack.c.l.b16 %v779
      %v991 = vunpack.c.l.b16 %v780
      %v992 = vunpack.c.l.b16 %v781
      %v993 = vunpack.c.l.b16 %v782
      %v994 = vpack.c.b16 %v987, %v986
      %v995 = vpack.c.b16 %v989, %v988
      %v996 = vpack.c.b16 %v991, %v990
      %v997 = vpack.c.b16 %v993, %v992
      %v1003 = vsel %vm670, %v773, 0
      %v1006 = vsel %vm670, %v774, 0
      %1008 = vmatpush.bf16.msra.mxu0 0
      %1009 = vmatpush.bf16.msra.mxu0 0
      %1010 = vmatpush.bf16.msra.mxu0 0
      %1011 = vmatpush.bf16.msra.mxu0 0
      %1012 = vmatpush.bf16.msra.mxu0 %v997
      %1013 = vmatpush.bf16.msra.mxu0 %v996
      %1014 = vmatpush.bf16.msra.mxu0 %v995
      %1015 = vmatpush.bf16.msra.mxu0 %v994
      %1016 = vmatmul.bf16.gmra.mxu0 %v1003
      %v1017 = vpop.f32.mrf.mxu0
      %v1018 = vadd.f32 %v969, %v1017
      %v1019 = vpop.f32.mrf.mxu0
      %v1020 = vadd.f32 %v971, %v1019
      %1021 = vmatmul.bf16.gmra.mxu0 %v1006
      %v1022 = vpop.f32.mrf.mxu0
      %v1023 = vadd.f32 %v974, %v1022
      %v1024 = vpop.f32.mrf.mxu0
      %v1025 = vadd.f32 %v976, %v1024
      %1026 = vdwg.mxu0
      %v1027 = vadd.f32 %v573, %v1018
      %v1028 = vadd.f32 %v574, %v1020
      %v1029 = vadd.f32 %v575, %v1023
      %v1030 = vadd.f32 %v576, %v1025
      %v1031 = vperm.slane %v469, 4
      %v1032 = vadd.f32 %v1027, %v1031
      %v1033 = vadd.f32 %v1028, %v1031
      %v1034 = vadd.f32 %v1029, %v1031
      %v1035 = vadd.f32 %v1030, %v1031
      %v1036 = vsel %vm471, %v1032, 0.0
      %1037 = vadd.xlane.f32.xlu0 %v1036
      %v1038 = vpop.xlane.xlu0 %1037
      %v1039 = vsel %vm471, %v1033, 0.0
      %1040 = vadd.xlane.f32.xlu0 %v1039
      %v1041 = vpop.xlane.xlu0 %1040
      %v1042 = vsel %vm471, %v1034, 0.0
      %1043 = vadd.xlane.f32.xlu0 %v1042
      %v1044 = vpop.xlane.xlu0 %1043
      %v1045 = vsel %vm471, %v1035, 0.0
      %1046 = vadd.xlane.f32.xlu0 %v1045
      %v1047 = vpop.xlane.xlu0 %1046
      %v1048 = vmul.f32 %v1038, %v490
      %v1049 = vmul.f32 %v1041, %v490
      %v1050 = vmul.f32 %v1044, %v490
      %v1051 = vmul.f32 %v1047, %v490
      %v1052 = vsub.f32 %v1032, %v1048
      %v1053 = vsub.f32 %v1033, %v1049
      %v1054 = vsub.f32 %v1034, %v1050
      %v1055 = vsub.f32 %v1035, %v1051
      %v1056 = vmul.f32 %v1052, %v1052
      %v1057 = vmul.f32 %v1053, %v1053
      %v1058 = vmul.f32 %v1054, %v1054
      %v1059 = vmul.f32 %v1055, %v1055
      %v1060 = vsel %vm471, %v1056, 0.0
      %1061 = vadd.xlane.f32.xlu0 %v1060
      %v1062 = vpop.xlane.xlu0 %1061
      %v1063 = vsel %vm471, %v1057, 0.0
      %1064 = vadd.xlane.f32.xlu0 %v1063
      %v1065 = vpop.xlane.xlu0 %1064
      %v1066 = vsel %vm471, %v1058, 0.0
      %1067 = vadd.xlane.f32.xlu0 %v1066
      %v1068 = vpop.xlane.xlu0 %1067
      %v1069 = vsel %vm471, %v1059, 0.0
      %1070 = vadd.xlane.f32.xlu0 %v1069
      %v1071 = vpop.xlane.xlu0 %1070
      %v1072 = vmul.f32 %v1062, %v490
      %v1073 = vmul.f32 %v1065, %v490
      %v1074 = vmul.f32 %v1068, %v490
      %v1075 = vmul.f32 %v1071, %v490
      %v1076 = vadd.f32 %v1072, 1e-08
      %v1077 = vadd.f32 %v1073, 1e-08
      %v1078 = vadd.f32 %v1074, 1e-08
      %v1079 = vadd.f32 %v1075, 1e-08
      %v1080 = vrsqrt.pop %v1076
      %v1081 = vmul.f32 %v1080, %v1076
      %v1082 = vmul.f32 %v1081, %v1080
      %v1083 = vmul.f32 0.5, %v1082
      %v1084 = vsub.f32 1.5, %v1083
      %v1085 = vmul.f32 %v1080, %v1084
      %vm1086 = vweird.f32 %v1076
      %vm1087 = vweird.f32 %v1080
      %vm1088 = vmor %vm1086, %vm1087
      %v1089 = vsel %vm1088, %v1080, %v1085
      %v1090 = vrsqrt.pop %v1077
      %v1091 = vmul.f32 %v1090, %v1077
      %v1092 = vmul.f32 %v1091, %v1090
      %v1093 = vmul.f32 0.5, %v1092
      %v1094 = vsub.f32 1.5, %v1093
      %v1095 = vmul.f32 %v1090, %v1094
      %vm1096 = vweird.f32 %v1077
      %vm1097 = vweird.f32 %v1090
      %vm1098 = vmor %vm1096, %vm1097
      %v1099 = vsel %vm1098, %v1090, %v1095
      %v1100 = vrsqrt.pop %v1078
      %v1101 = vmul.f32 %v1100, %v1078
      %v1102 = vmul.f32 %v1101, %v1100
      %v1103 = vmul.f32 0.5, %v1102
      %v1104 = vsub.f32 1.5, %v1103
      %v1105 = vmul.f32 %v1100, %v1104
      %vm1106 = vweird.f32 %v1078
      %vm1107 = vweird.f32 %v1100
      %vm1108 = vmor %vm1106, %vm1107
      %v1109 = vsel %vm1108, %v1100, %v1105
      %v1110 = vrsqrt.pop %v1079
      %v1111 = vmul.f32 %v1110, %v1079
      %v1112 = vmul.f32 %v1111, %v1110
      %v1113 = vmul.f32 0.5, %v1112
      %v1114 = vsub.f32 1.5, %v1113
      %v1115 = vmul.f32 %v1110, %v1114
      %vm1116 = vweird.f32 %v1079
      %vm1117 = vweird.f32 %v1110
      %vm1118 = vmor %vm1116, %vm1117
      %v1119 = vsel %vm1118, %v1110, %v1115
      %v1120 = vmul.f32 %v1052, %v1089
      %v1121 = vmul.f32 %v1053, %v1099
      %v1122 = vmul.f32 %v1054, %v1109
      %v1123 = vmul.f32 %v1055, %v1119
      %v1124 = vperm.slane %v469, 2
      %v1125 = vmul.f32 %v1120, %v1124
      %v1126 = vmul.f32 %v1121, %v1124
      %v1127 = vmul.f32 %v1122, %v1124
      %v1128 = vmul.f32 %v1123, %v1124
      %v1129 = vperm.slane %v469, 3
      %v1130 = vadd.f32 %v1125, %v1129
      %v1131 = vadd.f32 %v1126, %v1129
      %v1132 = vadd.f32 %v1127, %v1129
      %v1133 = vadd.f32 %v1128, %v1129
      %v1134 = vpack.c.bf16 %v1131, %v1130
      %v1135 = vpack.c.bf16 %v1133, %v1132
      %v1136 = vld [vmem:[%s7] sm:$0xf]
      %v1137 = vld [vmem:[%s7 + $0x4] sm:$0xf]
      %v1138 = vld [vmem:[%s7 + $0x8] sm:$0xf]
      %v1139 = vld [vmem:[%s7 + $0xc] sm:$0xf]
      %v1140 = vperm.slane %v469, 5
      %v1145 = vunpack.c.l.b16 %v1136
      %v1146 = vunpack.c.l.b16 %v1137
      %v1147 = vunpack.c.l.b16 %v1138
      %v1148 = vunpack.c.l.b16 %v1139
      %v1149 = vpack.c.b16 %v1146, %v1145
      %v1150 = vpack.c.b16 %v1148, %v1147
      %v1154 = vsel %vm471, %v1134, 0
      %v1157 = vsel %vm471, %v1135, 0
      %1159 = vmatpush.bf16.msra.mxu0 0
      %1160 = vmatpush.bf16.msra.mxu0 0
      %1161 = vmatpush.bf16.msra.mxu0 0
      %1162 = vmatpush.bf16.msra.mxu0 0
      %1163 = vmatpush.bf16.msra.mxu0 0
      %1164 = vmatpush.bf16.msra.mxu0 0
      %1165 = vmatpush.bf16.msra.mxu0 %v1150
      %1166 = vmatpush.bf16.msra.mxu0 %v1149
      %1167 = vmatmul.bf16.gmra.mxu0 %v1154
      %v1168 = vpop.f32.mrf.mxu0
      %v1169 = vadd.f32 %v1140, %v1168
      %v1170 = vpop.f32.mrf.mxu0
      %v1171 = vadd.f32 %v1140, %v1170
      %1172 = vmatmul.bf16.gmra.mxu0 %v1157
      %v1173 = vpop.f32.mrf.mxu0
      %v1174 = vadd.f32 %v1140, %v1173
      %v1175 = vpop.f32.mrf.mxu0
      %v1176 = vadd.f32 %v1140, %v1175
      %1177 = vdwg.mxu0
      %v1178 = vmax.f32 %v1169, 0.0
      %v1179 = vmax.f32 %v1171, 0.0
      %v1180 = vmax.f32 %v1174, 0.0
      %v1181 = vmax.f32 %v1176, 0.0
      %v1182 = vpack.c.bf16 %v1179, %v1178
      %v1183 = vpack.c.bf16 %v1181, %v1180
      %s1184 = scalar_lea.vmem %s7, 16
      %v1185 = vld [vmem:[%s1184] sm:$0xf]
      %v1186 = vld [vmem:[%s1184 + $0x4] sm:$0xf]
      %v1187 = vld [vmem:[%s1184 + $0x8] sm:$0xf]
      %v1188 = vld [vmem:[%s1184 + $0xc] sm:$0xf]
      %v1189 = vperm.slane %v469, 6
      %v1194 = vunpack.c.l.b16 %v1185
      %v1195 = vunpack.c.l.b16 %v1186
      %v1196 = vunpack.c.l.b16 %v1187
      %v1197 = vunpack.c.l.b16 %v1188
      %v1198 = vpack.c.b16 %v1195, %v1194
      %v1199 = vpack.c.b16 %v1197, %v1196
      %v1203 = vsel %vm471, %v1182, 0
      %v1206 = vsel %vm471, %v1183, 0
      %1208 = vmatpush.bf16.msra.mxu0 0
      %1209 = vmatpush.bf16.msra.mxu0 0
      %1210 = vmatpush.bf16.msra.mxu0 0
      %1211 = vmatpush.bf16.msra.mxu0 0
      %1212 = vmatpush.bf16.msra.mxu0 0
      %1213 = vmatpush.bf16.msra.mxu0 0
      %1214 = vmatpush.bf16.msra.mxu0 %v1199
      %1215 = vmatpush.bf16.msra.mxu0 %v1198
      %1216 = vmatmul.bf16.gmra.mxu0 %v1203
      %v1217 = vpop.f32.mrf.mxu0
      %v1218 = vadd.f32 %v1189, %v1217
      %v1219 = vpop.f32.mrf.mxu0
      %v1220 = vadd.f32 %v1189, %v1219
      %1221 = vmatmul.bf16.gmra.mxu0 %v1206
      %v1222 = vpop.f32.mrf.mxu0
      %v1223 = vadd.f32 %v1189, %v1222
      %v1224 = vpop.f32.mrf.mxu0
      %v1225 = vadd.f32 %v1189, %v1224
      %1226 = vdwg.mxu0
      %v1227 = vadd.f32 %v1218, %v1130
      %v1228 = vadd.f32 %v1220, %v1131
      %v1229 = vadd.f32 %v1223, %v1132
      %v1230 = vadd.f32 %v1225, %v1133
      %1232 = vset.pattern.permute.xlu0 0
      %1233 = vperm.xlu0 %1232, %v465
      %v1234 = vpop.permute.xlu0 %1233
      %1237 = vset.pattern.permute.xlu0 0
      %1238 = vperm.xlu0 %1237, %v466
      %v1239 = vpop.permute.xlu0 %1238
      %1242 = vset.pattern.permute.xlu0 0
      %1243 = vperm.xlu0 %1242, %v467
      %v1244 = vpop.permute.xlu0 %1243
      %1247 = vset.pattern.permute.xlu0 0
      %1248 = vperm.xlu0 %1247, %v468
      %v1249 = vpop.permute.xlu0 %1248
      %v1251 = vmul.f32 %v1227, %v1234
      %v1252 = vmul.f32 %v1228, %v1239
      %v1253 = vmul.f32 %v1229, %v1244
      %v1254 = vmul.f32 %v1230, %v1249
      %s1255 = scalar_lea.vmem %s8, 8
      %v1256 = vld [vmem:[%s1255] sm:$0x7f]
      %s1257 = scalar_lea.vmem %s9, 4
      %v1258 = vld [vmem:[%s1257] sm:$0x7]
      %v1259 = vsel %vm471, %v1251, 0.0
      %1260 = vadd.xlane.f32.xlu0 %v1259
      %v1261 = vpop.xlane.xlu0 %1260
      %v1262 = vsel %vm471, %v1252, 0.0
      %1263 = vadd.xlane.f32.xlu0 %v1262
      %v1264 = vpop.xlane.xlu0 %1263
      %v1265 = vsel %vm471, %v1253, 0.0
      %1266 = vadd.xlane.f32.xlu0 %v1265
      %v1267 = vpop.xlane.xlu0 %1266
      %v1268 = vsel %vm471, %v1254, 0.0
      %1269 = vadd.xlane.f32.xlu0 %v1268
      %v1270 = vpop.xlane.xlu0 %1269
      %v1271 = vmul.f32 %v1261, %v490
      %v1272 = vmul.f32 %v1264, %v490
      %v1273 = vmul.f32 %v1267, %v490
      %v1274 = vmul.f32 %v1270, %v490
      %v1275 = vsub.f32 %v1251, %v1271
      %v1276 = vsub.f32 %v1252, %v1272
      %v1277 = vsub.f32 %v1253, %v1273
      %v1278 = vsub.f32 %v1254, %v1274
      %v1279 = vmul.f32 %v1275, %v1275
      %v1280 = vmul.f32 %v1276, %v1276
      %v1281 = vmul.f32 %v1277, %v1277
      %v1282 = vmul.f32 %v1278, %v1278
      %v1283 = vsel %vm471, %v1279, 0.0
      %1284 = vadd.xlane.f32.xlu0 %v1283
      %v1285 = vpop.xlane.xlu0 %1284
      %v1286 = vsel %vm471, %v1280, 0.0
      %1287 = vadd.xlane.f32.xlu0 %v1286
      %v1288 = vpop.xlane.xlu0 %1287
      %v1289 = vsel %vm471, %v1281, 0.0
      %1290 = vadd.xlane.f32.xlu0 %v1289
      %v1291 = vpop.xlane.xlu0 %1290
      %v1292 = vsel %vm471, %v1282, 0.0
      %1293 = vadd.xlane.f32.xlu0 %v1292
      %v1294 = vpop.xlane.xlu0 %1293
      %v1295 = vmul.f32 %v1285, %v490
      %v1296 = vmul.f32 %v1288, %v490
      %v1297 = vmul.f32 %v1291, %v490
      %v1298 = vmul.f32 %v1294, %v490
      %v1299 = vadd.f32 %v1295, 1e-08
      %v1300 = vadd.f32 %v1296, 1e-08
      %v1301 = vadd.f32 %v1297, 1e-08
      %v1302 = vadd.f32 %v1298, 1e-08
      %v1303 = vrsqrt.pop %v1299
      %v1304 = vmul.f32 %v1303, %v1299
      %v1305 = vmul.f32 %v1304, %v1303
      %v1306 = vmul.f32 0.5, %v1305
      %v1307 = vsub.f32 1.5, %v1306
      %v1308 = vmul.f32 %v1303, %v1307
      %vm1309 = vweird.f32 %v1299
      %vm1310 = vweird.f32 %v1303
      %vm1311 = vmor %vm1309, %vm1310
      %v1312 = vsel %vm1311, %v1303, %v1308
      %v1313 = vrsqrt.pop %v1300
      %v1314 = vmul.f32 %v1313, %v1300
      %v1315 = vmul.f32 %v1314, %v1313
      %v1316 = vmul.f32 0.5, %v1315
      %v1317 = vsub.f32 1.5, %v1316
      %v1318 = vmul.f32 %v1313, %v1317
      %vm1319 = vweird.f32 %v1300
      %vm1320 = vweird.f32 %v1313
      %vm1321 = vmor %vm1319, %vm1320
      %v1322 = vsel %vm1321, %v1313, %v1318
      %v1323 = vrsqrt.pop %v1301
      %v1324 = vmul.f32 %v1323, %v1301
      %v1325 = vmul.f32 %v1324, %v1323
      %v1326 = vmul.f32 0.5, %v1325
      %v1327 = vsub.f32 1.5, %v1326
      %v1328 = vmul.f32 %v1323, %v1327
      %vm1329 = vweird.f32 %v1301
      %vm1330 = vweird.f32 %v1323
      %vm1331 = vmor %vm1329, %vm1330
      %v1332 = vsel %vm1331, %v1323, %v1328
      %v1333 = vrsqrt.pop %v1302
      %v1334 = vmul.f32 %v1333, %v1302
      %v1335 = vmul.f32 %v1334, %v1333
      %v1336 = vmul.f32 0.5, %v1335
      %v1337 = vsub.f32 1.5, %v1336
      %v1338 = vmul.f32 %v1333, %v1337
      %vm1339 = vweird.f32 %v1302
      %vm1340 = vweird.f32 %v1333
      %vm1341 = vmor %vm1339, %vm1340
      %v1342 = vsel %vm1341, %v1333, %v1338
      %v1343 = vmul.f32 %v1275, %v1312
      %v1344 = vmul.f32 %v1276, %v1322
      %v1345 = vmul.f32 %v1277, %v1332
      %v1346 = vmul.f32 %v1278, %v1342
      %v1347 = vperm.slane %v1256, 0
      %v1348 = vmul.f32 %v1343, %v1347
      %v1349 = vmul.f32 %v1344, %v1347
      %v1350 = vmul.f32 %v1345, %v1347
      %v1351 = vmul.f32 %v1346, %v1347
      %v1352 = vperm.slane %v1256, 1
      %v1353 = vadd.f32 %v1348, %v1352
      %v1354 = vadd.f32 %v1349, %v1352
      %v1355 = vadd.f32 %v1350, %v1352
      %v1356 = vadd.f32 %v1351, %v1352
      %v1357 = vpack.c.bf16 %v1354, %v1353
      %v1358 = vpack.c.bf16 %v1356, %v1355
      %v1359 = vpack.c.bf16 %v1252, %v1251
      %v1360 = vpack.c.bf16 %v1254, %v1253
      %s1361 = scalar_lea.vmem %s5, 80
      %v1362 = vld [vmem:[%s1361] sm:$0xf]
      %v1363 = vld [vmem:[%s1361 + $0x4] sm:$0xf]
      %v1364 = vld [vmem:[%s1361 + $0x8] sm:$0xf]
      %v1365 = vld [vmem:[%s1361 + $0xc] sm:$0xf]
      %v1366 = vperm.slane %v1258, 2
      %v1371 = vunpack.c.l.b16 %v1362
      %v1372 = vunpack.c.l.b16 %v1363
      %v1373 = vunpack.c.l.b16 %v1364
      %v1374 = vunpack.c.l.b16 %v1365
      %v1375 = vpack.c.b16 %v1372, %v1371
      %v1376 = vpack.c.b16 %v1374, %v1373
      %v1380 = vsel %vm471, %v1359, 0
      %v1383 = vsel %vm471, %v1360, 0
      %1385 = vmatpush.bf16.msra.mxu0 0
      %1386 = vmatpush.bf16.msra.mxu0 0
      %1387 = vmatpush.bf16.msra.mxu0 0
      %1388 = vmatpush.bf16.msra.mxu0 0
      %1389 = vmatpush.bf16.msra.mxu0 0
      %1390 = vmatpush.bf16.msra.mxu0 0
      %1391 = vmatpush.bf16.msra.mxu0 %v1376
      %1392 = vmatpush.bf16.msra.mxu0 %v1375
      %1393 = vmatmul.bf16.gmra.mxu0 %v1380
      %v1394 = vpop.f32.mrf.mxu0
      %v1395 = vadd.f32 %v1366, %v1394
      %v1396 = vpop.f32.mrf.mxu0
      %v1397 = vadd.f32 %v1366, %v1396
      %1398 = vmatmul.bf16.gmra.mxu0 %v1383
      %v1399 = vpop.f32.mrf.mxu0
      %v1400 = vadd.f32 %v1366, %v1399
      %v1401 = vpop.f32.mrf.mxu0
      %v1402 = vadd.f32 %v1366, %v1401
      %1403 = vdwg.mxu0
      %v1404 = vpack.c.bf16 %v1397, %v1395
      %v1405 = vpack.c.bf16 %v1402, %v1400
      %s1406 = scalar_lea.vmem %s5, 48
      %v1407 = vld [vmem:[%s1406] sm:$0xf]
      %v1408 = vld [vmem:[%s1406 + $0x4] sm:$0xf]
      %v1409 = vld [vmem:[%s1406 + $0x8] sm:$0xf]
      %v1410 = vld [vmem:[%s1406 + $0xc] sm:$0xf]
      %v1411 = vperm.slane %v1258, 0
      %v1416 = vunpack.c.l.b16 %v1407
      %v1417 = vunpack.c.l.b16 %v1408
      %v1418 = vunpack.c.l.b16 %v1409
      %v1419 = vunpack.c.l.b16 %v1410
      %v1420 = vpack.c.b16 %v1417, %v1416
      %v1421 = vpack.c.b16 %v1419, %v1418
      %v1425 = vsel %vm471, %v1357, 0
      %v1428 = vsel %vm471, %v1358, 0
      %1430 = vmatpush.bf16.msra.mxu0 0
      %1431 = vmatpush.bf16.msra.mxu0 0
      %1432 = vmatpush.bf16.msra.mxu0 0
      %1433 = vmatpush.bf16.msra.mxu0 0
      %1434 = vmatpush.bf16.msra.mxu0 0
      %1435 = vmatpush.bf16.msra.mxu0 0
      %1436 = vmatpush.bf16.msra.mxu0 %v1421
      %1437 = vmatpush.bf16.msra.mxu0 %v1420
      %1438 = vmatmul.bf16.gmra.mxu0 %v1425
      %v1439 = vpop.f32.mrf.mxu0
      %v1440 = vadd.f32 %v1411, %v1439
      %v1441 = vpop.f32.mrf.mxu0
      %v1442 = vadd.f32 %v1411, %v1441
      %1443 = vmatmul.bf16.gmra.mxu0 %v1428
      %v1444 = vpop.f32.mrf.mxu0
      %v1445 = vadd.f32 %v1411, %v1444
      %v1446 = vpop.f32.mrf.mxu0
      %v1447 = vadd.f32 %v1411, %v1446
      %1448 = vdwg.mxu0
      %v1449 = vpack.c.bf16 %v1442, %v1440
      %v1450 = vpack.c.bf16 %v1447, %v1445
      %v1452 = vsel %vm670, %v1449, 0
      %v1455 = vsel %vm670, %v1450, 0
      %v1458 = vsel %vm670, %v1404, 0
      %v1461 = vsel %vm670, %v1405, 0
      %1463 = vmatpush.bf16.xpose.msra.mxu0 0
      %1464 = vmatpush.bf16.xpose.msra.mxu0 0
      %1465 = vmatpush.bf16.xpose.msra.mxu0 0
      %1466 = vmatpush.bf16.xpose.msra.mxu0 0
      %1467 = vmatpush.bf16.xpose.msra.mxu0 0
      %1468 = vmatpush.bf16.xpose.msra.mxu0 0
      %1469 = vmatpush.bf16.xpose.msra.mxu0 %v1461
      %1470 = vmatpush.bf16.xpose.msra.mxu0 %v1458
      %1471 = vmatmul.bf16.gmra.mxu0 %v1452
      %v1472 = vpop.f32.mrf.mxu0
      %v1473 = vadd.f32 %v455, %v1472
      %v1474 = vpop.f32.mrf.mxu0
      %v1475 = vadd.f32 %v456, %v1474
      %1476 = vmatmul.bf16.gmra.mxu0 %v1455
      %v1477 = vpop.f32.mrf.mxu0
      %v1478 = vadd.f32 %v457, %v1477
      %v1479 = vpop.f32.mrf.mxu0
      %v1480 = vadd.f32 %v458, %v1479
      %1481 = vdwg.mxu0
      %v1482 = vsel %vm471, %v1473, -inf
      %1483 = vmax.xlane.f32.xlu0 %v1482
      %v1484 = vpop.xlane.xlu0 %1483
      %v1485 = vsel %vm471, %v1475, -inf
      %1486 = vmax.xlane.f32.xlu0 %v1485
      %v1487 = vpop.xlane.xlu0 %1486
      %v1488 = vsel %vm471, %v1478, -inf
      %1489 = vmax.xlane.f32.xlu0 %v1488
      %v1490 = vpop.xlane.xlu0 %1489
      %v1491 = vsel %vm471, %v1480, -inf
      %1492 = vmax.xlane.f32.xlu0 %v1491
      %v1493 = vpop.xlane.xlu0 %1492
      %v1494 = vsub.f32 %v1473, %v1484
      %v1495 = vsub.f32 %v1475, %v1487
      %v1496 = vsub.f32 %v1478, %v1490
      %v1497 = vsub.f32 %v1480, %v1493
      %v1498 = vmul.f32 %v1494, 1.442695
      %v1499 = vpow.pop %v1498
      %v1500 = vmul.f32 %v1495, 1.442695
      %v1501 = vpow.pop %v1500
      %v1502 = vmul.f32 %v1496, 1.442695
      %v1503 = vpow.pop %v1502
      %v1504 = vmul.f32 %v1497, 1.442695
      %v1505 = vpow.pop %v1504
      %v1506 = vsel %vm471, %v1499, 0.0
      %1507 = vadd.xlane.f32.xlu0 %v1506
      %v1508 = vpop.xlane.xlu0 %1507
      %v1509 = vsel %vm471, %v1501, 0.0
      %1510 = vadd.xlane.f32.xlu0 %v1509
      %v1511 = vpop.xlane.xlu0 %1510
      %v1512 = vsel %vm471, %v1503, 0.0
      %1513 = vadd.xlane.f32.xlu0 %v1512
      %v1514 = vpop.xlane.xlu0 %1513
      %v1515 = vsel %vm471, %v1505, 0.0
      %1516 = vadd.xlane.f32.xlu0 %v1515
      %v1517 = vpop.xlane.xlu0 %1516
      %v1518 = vrcp.pop %v1508
      %v1519 = vrcp.pop %v1511
      %v1520 = vrcp.pop %v1514
      %v1521 = vrcp.pop %v1517
      %v1522 = vmul.f32 %v1499, %v1518
      %v1523 = vmul.f32 %v1501, %v1519
      %v1524 = vmul.f32 %v1503, %v1520
      %v1525 = vmul.f32 %v1505, %v1521
      %v1526 = vpack.c.bf16 %v1523, %v1522
      %v1527 = vpack.c.bf16 %v1525, %v1524
      %v1529 = vsel %vm471, %v1526, 0
      %v1532 = vsel %vm471, %v1527, 0
      %1534 = vmatpush.bf16.msra.mxu0 0
      %1535 = vmatpush.bf16.msra.mxu0 0
      %1536 = vmatpush.bf16.msra.mxu0 0
      %1537 = vmatpush.bf16.msra.mxu0 0
      %1538 = vmatpush.bf16.msra.mxu0 0
      %1539 = vmatpush.bf16.msra.mxu0 0
      %1540 = vmatpush.bf16.msra.mxu0 %v1405
      %1541 = vmatpush.bf16.msra.mxu0 %v1404
      %1542 = vmatmul.bf16.gmra.mxu0 %v1529
      %v1543 = vpop.f32.mrf.mxu0
      %v1544 = vadd.f32 0.0, %v1543
      %v1545 = vpop.f32.mrf.mxu0
      %v1546 = vadd.f32 0.0, %v1545
      %1547 = vmatmul.bf16.gmra.mxu0 %v1532
      %v1548 = vpop.f32.mrf.mxu0
      %v1549 = vadd.f32 0.0, %v1548
      %v1550 = vpop.f32.mrf.mxu0
      %v1551 = vadd.f32 0.0, %v1550
      %1552 = vdwg.mxu0
      %v1553 = vpack.c.bf16 %v1546, %v1544
      %v1554 = vpack.c.bf16 %v1551, %v1549
      %s1555 = scalar_lea.vmem %s6, 64
      %v1556 = vld [vmem:[%s1555] sm:$0xf]
      %v1557 = vld [vmem:[%s1555 + $0x4] sm:$0xf]
      %v1558 = vld [vmem:[%s1555 + $0x8] sm:$0xf]
      %v1559 = vld [vmem:[%s1555 + $0xc] sm:$0xf]
      %v1560 = vld [vmem:[%s1555 + $0x10] sm:$0xf]
      %v1561 = vld [vmem:[%s1555 + $0x14] sm:$0xf]
      %v1562 = vld [vmem:[%s1555 + $0x18] sm:$0xf]
      %v1563 = vld [vmem:[%s1555 + $0x1c] sm:$0xf]
      %s1564 = scalar_lea.vmem %s5, 64
      %v1565 = vld [vmem:[%s1564] sm:$0xf]
      %v1566 = vld [vmem:[%s1564 + $0x4] sm:$0xf]
      %v1567 = vld [vmem:[%s1564 + $0x8] sm:$0xf]
      %v1568 = vld [vmem:[%s1564 + $0xc] sm:$0xf]
      %v1569 = vperm.slane %v1258, 1
      %v1574 = vunpack.c.l.b16 %v1565
      %v1575 = vunpack.c.l.b16 %v1566
      %v1576 = vunpack.c.l.b16 %v1567
      %v1577 = vunpack.c.l.b16 %v1568
      %v1578 = vpack.c.b16 %v1575, %v1574
      %v1579 = vpack.c.b16 %v1577, %v1576
      %1582 = vmatpush.bf16.msra.mxu0 0
      %1583 = vmatpush.bf16.msra.mxu0 0
      %1584 = vmatpush.bf16.msra.mxu0 0
      %1585 = vmatpush.bf16.msra.mxu0 0
      %1586 = vmatpush.bf16.msra.mxu0 0
      %1587 = vmatpush.bf16.msra.mxu0 0
      %1588 = vmatpush.bf16.msra.mxu0 %v1579
      %1589 = vmatpush.bf16.msra.mxu0 %v1578
      %1590 = vmatmul.bf16.gmra.mxu0 %v1425
      %v1591 = vpop.f32.mrf.mxu0
      %v1592 = vadd.f32 %v1569, %v1591
      %v1593 = vpop.f32.mrf.mxu0
      %v1594 = vadd.f32 %v1569, %v1593
      %1595 = vmatmul.bf16.gmra.mxu0 %v1428
      %v1596 = vpop.f32.mrf.mxu0
      %v1597 = vadd.f32 %v1569, %v1596
      %v1598 = vpop.f32.mrf.mxu0
      %v1599 = vadd.f32 %v1569, %v1598
      %1600 = vdwg.mxu0
      %v1601 = vpack.c.bf16 %v1594, %v1592
      %v1602 = vpack.c.bf16 %v1599, %v1597
      %v1604 = vsel %vm670, %v1601, 0
      %v1607 = vsel %vm670, %v1602, 0
      %1609 = vmatpush.bf16.xpose.msra.mxu0 0
      %1610 = vmatpush.bf16.xpose.msra.mxu0 0
      %1611 = vmatpush.bf16.xpose.msra.mxu0 0
      %1612 = vmatpush.bf16.xpose.msra.mxu0 0
      %1613 = vmatpush.bf16.xpose.msra.mxu0 0
      %1614 = vmatpush.bf16.xpose.msra.mxu0 0
      %1615 = vmatpush.bf16.xpose.msra.mxu0 %v1461
      %1616 = vmatpush.bf16.xpose.msra.mxu0 %v1458
      %1617 = vmatmul.bf16.gmra.mxu0 %v1604
      %v1618 = vpop.f32.mrf.mxu0
      %v1619 = vadd.f32 %v455, %v1618
      %v1620 = vpop.f32.mrf.mxu0
      %v1621 = vadd.f32 %v456, %v1620
      %1622 = vmatmul.bf16.gmra.mxu0 %v1607
      %v1623 = vpop.f32.mrf.mxu0
      %v1624 = vadd.f32 %v457, %v1623
      %v1625 = vpop.f32.mrf.mxu0
      %v1626 = vadd.f32 %v458, %v1625
      %1627 = vdwg.mxu0
      %v1628 = vsel %vm471, %v1619, -inf
      %1629 = vmax.xlane.f32.xlu0 %v1628
      %v1630 = vpop.xlane.xlu0 %1629
      %v1631 = vsel %vm471, %v1621, -inf
      %1632 = vmax.xlane.f32.xlu0 %v1631
      %v1633 = vpop.xlane.xlu0 %1632
      %v1634 = vsel %vm471, %v1624, -inf
      %1635 = vmax.xlane.f32.xlu0 %v1634
      %v1636 = vpop.xlane.xlu0 %1635
      %v1637 = vsel %vm471, %v1626, -inf
      %1638 = vmax.xlane.f32.xlu0 %v1637
      %v1639 = vpop.xlane.xlu0 %1638
      %v1640 = vsub.f32 %v1619, %v1630
      %v1641 = vsub.f32 %v1621, %v1633
      %v1642 = vsub.f32 %v1624, %v1636
      %v1643 = vsub.f32 %v1626, %v1639
      %v1644 = vmul.f32 %v1640, 1.442695
      %v1645 = vpow.pop %v1644
      %v1646 = vmul.f32 %v1641, 1.442695
      %v1647 = vpow.pop %v1646
      %v1648 = vmul.f32 %v1642, 1.442695
      %v1649 = vpow.pop %v1648
      %v1650 = vmul.f32 %v1643, 1.442695
      %v1651 = vpow.pop %v1650
      %v1652 = vsel %vm471, %v1645, 0.0
      %1653 = vadd.xlane.f32.xlu0 %v1652
      %v1654 = vpop.xlane.xlu0 %1653
      %v1655 = vsel %vm471, %v1647, 0.0
      %1656 = vadd.xlane.f32.xlu0 %v1655
      %v1657 = vpop.xlane.xlu0 %1656
      %v1658 = vsel %vm471, %v1649, 0.0
      %1659 = vadd.xlane.f32.xlu0 %v1658
      %v1660 = vpop.xlane.xlu0 %1659
      %v1661 = vsel %vm471, %v1651, 0.0
      %1662 = vadd.xlane.f32.xlu0 %v1661
      %v1663 = vpop.xlane.xlu0 %1662
      %v1664 = vrcp.pop %v1654
      %v1665 = vrcp.pop %v1657
      %v1666 = vrcp.pop %v1660
      %v1667 = vrcp.pop %v1663
      %v1668 = vmul.f32 %v1645, %v1664
      %v1669 = vmul.f32 %v1647, %v1665
      %v1670 = vmul.f32 %v1649, %v1666
      %v1671 = vmul.f32 %v1651, %v1667
      %v1672 = vpack.c.bf16 %v1669, %v1668
      %v1673 = vpack.c.bf16 %v1671, %v1670
      %v1675 = vsel %vm471, %v1672, 0
      %v1678 = vsel %vm471, %v1673, 0
      %1680 = vmatpush.bf16.msra.mxu0 0
      %1681 = vmatpush.bf16.msra.mxu0 0
      %1682 = vmatpush.bf16.msra.mxu0 0
      %1683 = vmatpush.bf16.msra.mxu0 0
      %1684 = vmatpush.bf16.msra.mxu0 0
      %1685 = vmatpush.bf16.msra.mxu0 0
      %1686 = vmatpush.bf16.msra.mxu0 %v1405
      %1687 = vmatpush.bf16.msra.mxu0 %v1404
      %1688 = vmatmul.bf16.gmra.mxu0 %v1675
      %v1689 = vpop.f32.mrf.mxu0
      %v1690 = vadd.f32 0.0, %v1689
      %v1691 = vpop.f32.mrf.mxu0
      %v1692 = vadd.f32 0.0, %v1691
      %1693 = vmatmul.bf16.gmra.mxu0 %v1678
      %v1694 = vpop.f32.mrf.mxu0
      %v1695 = vadd.f32 0.0, %v1694
      %v1696 = vpop.f32.mrf.mxu0
      %v1697 = vadd.f32 0.0, %v1696
      %1698 = vdwg.mxu0
      %v1699 = vpack.c.bf16 %v1692, %v1690
      %v1700 = vpack.c.bf16 %v1697, %v1695
      %s1701 = scalar_lea.vmem %s6, 96
      %v1702 = vld [vmem:[%s1701] sm:$0xf]
      %v1703 = vld [vmem:[%s1701 + $0x4] sm:$0xf]
      %v1704 = vld [vmem:[%s1701 + $0x8] sm:$0xf]
      %v1705 = vld [vmem:[%s1701 + $0xc] sm:$0xf]
      %v1706 = vld [vmem:[%s1701 + $0x10] sm:$0xf]
      %v1707 = vld [vmem:[%s1701 + $0x14] sm:$0xf]
      %v1708 = vld [vmem:[%s1701 + $0x18] sm:$0xf]
      %v1709 = vld [vmem:[%s1701 + $0x1c] sm:$0xf]
      %v1718 = vunpack.c.l.b16 %v1702
      %v1719 = vunpack.c.l.b16 %v1703
      %v1720 = vunpack.c.l.b16 %v1704
      %v1721 = vunpack.c.l.b16 %v1705
      %v1722 = vunpack.c.l.b16 %v1706
      %v1723 = vunpack.c.l.b16 %v1707
      %v1724 = vunpack.c.l.b16 %v1708
      %v1725 = vunpack.c.l.b16 %v1709
      %v1726 = vpack.c.b16 %v1719, %v1718
      %v1727 = vpack.c.b16 %v1721, %v1720
      %v1728 = vpack.c.b16 %v1723, %v1722
      %v1729 = vpack.c.b16 %v1725, %v1724
      %v1735 = vsel %vm670, %v1699, 0
      %v1738 = vsel %vm670, %v1700, 0
      %1740 = vmatpush.bf16.msra.mxu0 0
      %1741 = vmatpush.bf16.msra.mxu0 0
      %1742 = vmatpush.bf16.msra.mxu0 0
      %1743 = vmatpush.bf16.msra.mxu0 0
      %1744 = vmatpush.bf16.msra.mxu0 %v1729
      %1745 = vmatpush.bf16.msra.mxu0 %v1728
      %1746 = vmatpush.bf16.msra.mxu0 %v1727
      %1747 = vmatpush.bf16.msra.mxu0 %v1726
      %1748 = vmatmul.bf16.gmra.mxu0 %v1735
      %v1749 = vpop.f32.mrf.mxu0
      %v1750 = vadd.f32 0.0, %v1749
      %v1751 = vpop.f32.mrf.mxu0
      %v1752 = vadd.f32 0.0, %v1751
      %1753 = vmatmul.bf16.gmra.mxu0 %v1738
      %v1754 = vpop.f32.mrf.mxu0
      %v1755 = vadd.f32 0.0, %v1754
      %v1756 = vpop.f32.mrf.mxu0
      %v1757 = vadd.f32 0.0, %v1756
      %1758 = vdwg.mxu0
      %v1767 = vunpack.c.l.b16 %v1556
      %v1768 = vunpack.c.l.b16 %v1557
      %v1769 = vunpack.c.l.b16 %v1558
      %v1770 = vunpack.c.l.b16 %v1559
      %v1771 = vunpack.c.l.b16 %v1560
      %v1772 = vunpack.c.l.b16 %v1561
      %v1773 = vunpack.c.l.b16 %v1562
      %v1774 = vunpack.c.l.b16 %v1563
      %v1775 = vpack.c.b16 %v1768, %v1767
      %v1776 = vpack.c.b16 %v1770, %v1769
      %v1777 = vpack.c.b16 %v1772, %v1771
      %v1778 = vpack.c.b16 %v1774, %v1773
      %v1784 = vsel %vm670, %v1553, 0
      %v1787 = vsel %vm670, %v1554, 0
      %1789 = vmatpush.bf16.msra.mxu0 0
      %1790 = vmatpush.bf16.msra.mxu0 0
      %1791 = vmatpush.bf16.msra.mxu0 0
      %1792 = vmatpush.bf16.msra.mxu0 0
      %1793 = vmatpush.bf16.msra.mxu0 %v1778
      %1794 = vmatpush.bf16.msra.mxu0 %v1777
      %1795 = vmatpush.bf16.msra.mxu0 %v1776
      %1796 = vmatpush.bf16.msra.mxu0 %v1775
      %1797 = vmatmul.bf16.gmra.mxu0 %v1784
      %v1798 = vpop.f32.mrf.mxu0
      %v1799 = vadd.f32 %v1750, %v1798
      %v1800 = vpop.f32.mrf.mxu0
      %v1801 = vadd.f32 %v1752, %v1800
      %1802 = vmatmul.bf16.gmra.mxu0 %v1787
      %v1803 = vpop.f32.mrf.mxu0
      %v1804 = vadd.f32 %v1755, %v1803
      %v1805 = vpop.f32.mrf.mxu0
      %v1806 = vadd.f32 %v1757, %v1805
      %1807 = vdwg.mxu0
      %v1808 = vadd.f32 %v1353, %v1799
      %v1809 = vadd.f32 %v1354, %v1801
      %v1810 = vadd.f32 %v1355, %v1804
      %v1811 = vadd.f32 %v1356, %v1806
      %v1812 = vperm.slane %v1256, 4
      %v1813 = vadd.f32 %v1808, %v1812
      %v1814 = vadd.f32 %v1809, %v1812
      %v1815 = vadd.f32 %v1810, %v1812
      %v1816 = vadd.f32 %v1811, %v1812
      %v1817 = vsel %vm471, %v1813, 0.0
      %1818 = vadd.xlane.f32.xlu0 %v1817
      %v1819 = vpop.xlane.xlu0 %1818
      %v1820 = vsel %vm471, %v1814, 0.0
      %1821 = vadd.xlane.f32.xlu0 %v1820
      %v1822 = vpop.xlane.xlu0 %1821
      %v1823 = vsel %vm471, %v1815, 0.0
      %1824 = vadd.xlane.f32.xlu0 %v1823
      %v1825 = vpop.xlane.xlu0 %1824
      %v1826 = vsel %vm471, %v1816, 0.0
      %1827 = vadd.xlane.f32.xlu0 %v1826
      %v1828 = vpop.xlane.xlu0 %1827
      %v1829 = vmul.f32 %v1819, %v490
      %v1830 = vmul.f32 %v1822, %v490
      %v1831 = vmul.f32 %v1825, %v490
      %v1832 = vmul.f32 %v1828, %v490
      %v1833 = vsub.f32 %v1813, %v1829
      %v1834 = vsub.f32 %v1814, %v1830
      %v1835 = vsub.f32 %v1815, %v1831
      %v1836 = vsub.f32 %v1816, %v1832
      %v1837 = vmul.f32 %v1833, %v1833
      %v1838 = vmul.f32 %v1834, %v1834
      %v1839 = vmul.f32 %v1835, %v1835
      %v1840 = vmul.f32 %v1836, %v1836
      %v1841 = vsel %vm471, %v1837, 0.0
      %1842 = vadd.xlane.f32.xlu0 %v1841
      %v1843 = vpop.xlane.xlu0 %1842
      %v1844 = vsel %vm471, %v1838, 0.0
      %1845 = vadd.xlane.f32.xlu0 %v1844
      %v1846 = vpop.xlane.xlu0 %1845
      %v1847 = vsel %vm471, %v1839, 0.0
      %1848 = vadd.xlane.f32.xlu0 %v1847
      %v1849 = vpop.xlane.xlu0 %1848
      %v1850 = vsel %vm471, %v1840, 0.0
      %1851 = vadd.xlane.f32.xlu0 %v1850
      %v1852 = vpop.xlane.xlu0 %1851
      %v1853 = vmul.f32 %v1843, %v490
      %v1854 = vmul.f32 %v1846, %v490
      %v1855 = vmul.f32 %v1849, %v490
      %v1856 = vmul.f32 %v1852, %v490
      %v1857 = vadd.f32 %v1853, 1e-08
      %v1858 = vadd.f32 %v1854, 1e-08
      %v1859 = vadd.f32 %v1855, 1e-08
      %v1860 = vadd.f32 %v1856, 1e-08
      %v1861 = vrsqrt.pop %v1857
      %v1862 = vmul.f32 %v1861, %v1857
      %v1863 = vmul.f32 %v1862, %v1861
      %v1864 = vmul.f32 0.5, %v1863
      %v1865 = vsub.f32 1.5, %v1864
      %v1866 = vmul.f32 %v1861, %v1865
      %vm1867 = vweird.f32 %v1857
      %vm1868 = vweird.f32 %v1861
      %vm1869 = vmor %vm1867, %vm1868
      %v1870 = vsel %vm1869, %v1861, %v1866
      %v1871 = vrsqrt.pop %v1858
      %v1872 = vmul.f32 %v1871, %v1858
      %v1873 = vmul.f32 %v1872, %v1871
      %v1874 = vmul.f32 0.5, %v1873
      %v1875 = vsub.f32 1.5, %v1874
      %v1876 = vmul.f32 %v1871, %v1875
      %vm1877 = vweird.f32 %v1858
      %vm1878 = vweird.f32 %v1871
      %vm1879 = vmor %vm1877, %vm1878
      %v1880 = vsel %vm1879, %v1871, %v1876
      %v1881 = vrsqrt.pop %v1859
      %v1882 = vmul.f32 %v1881, %v1859
      %v1883 = vmul.f32 %v1882, %v1881
      %v1884 = vmul.f32 0.5, %v1883
      %v1885 = vsub.f32 1.5, %v1884
      %v1886 = vmul.f32 %v1881, %v1885
      %vm1887 = vweird.f32 %v1859
      %vm1888 = vweird.f32 %v1881
      %vm1889 = vmor %vm1887, %vm1888
      %v1890 = vsel %vm1889, %v1881, %v1886
      %v1891 = vrsqrt.pop %v1860
      %v1892 = vmul.f32 %v1891, %v1860
      %v1893 = vmul.f32 %v1892, %v1891
      %v1894 = vmul.f32 0.5, %v1893
      %v1895 = vsub.f32 1.5, %v1894
      %v1896 = vmul.f32 %v1891, %v1895
      %vm1897 = vweird.f32 %v1860
      %vm1898 = vweird.f32 %v1891
      %vm1899 = vmor %vm1897, %vm1898
      %v1900 = vsel %vm1899, %v1891, %v1896
      %v1901 = vmul.f32 %v1833, %v1870
      %v1902 = vmul.f32 %v1834, %v1880
      %v1903 = vmul.f32 %v1835, %v1890
      %v1904 = vmul.f32 %v1836, %v1900
      %v1905 = vperm.slane %v1256, 2
      %v1906 = vmul.f32 %v1901, %v1905
      %v1907 = vmul.f32 %v1902, %v1905
      %v1908 = vmul.f32 %v1903, %v1905
      %v1909 = vmul.f32 %v1904, %v1905
      %v1910 = vperm.slane %v1256, 3
      %v1911 = vadd.f32 %v1906, %v1910
      %v1912 = vadd.f32 %v1907, %v1910
      %v1913 = vadd.f32 %v1908, %v1910
      %v1914 = vadd.f32 %v1909, %v1910
      %v1915 = vpack.c.bf16 %v1912, %v1911
      %v1916 = vpack.c.bf16 %v1914, %v1913
      %s1917 = scalar_lea.vmem %s7, 32
      %v1918 = vld [vmem:[%s1917] sm:$0xf]
      %v1919 = vld [vmem:[%s1917 + $0x4] sm:$0xf]
      %v1920 = vld [vmem:[%s1917 + $0x8] sm:$0xf]
      %v1921 = vld [vmem:[%s1917 + $0xc] sm:$0xf]
      %v1922 = vperm.slane %v1256, 5
      %v1927 = vunpack.c.l.b16 %v1918
      %v1928 = vunpack.c.l.b16 %v1919
      %v1929 = vunpack.c.l.b16 %v1920
      %v1930 = vunpack.c.l.b16 %v1921
      %v1931 = vpack.c.b16 %v1928, %v1927
      %v1932 = vpack.c.b16 %v1930, %v1929
      %v1936 = vsel %vm471, %v1915, 0
      %v1939 = vsel %vm471, %v1916, 0
      %1941 = vmatpush.bf16.msra.mxu0 0
      %1942 = vmatpush.bf16.msra.mxu0 0
      %1943 = vmatpush.bf16.msra.mxu0 0
      %1944 = vmatpush.bf16.msra.mxu0 0
      %1945 = vmatpush.bf16.msra.mxu0 0
      %1946 = vmatpush.bf16.msra.mxu0 0
      %1947 = vmatpush.bf16.msra.mxu0 %v1932
      %1948 = vmatpush.bf16.msra.mxu0 %v1931
      %1949 = vmatmul.bf16.gmra.mxu0 %v1936
      %v1950 = vpop.f32.mrf.mxu0
      %v1951 = vadd.f32 %v1922, %v1950
      %v1952 = vpop.f32.mrf.mxu0
      %v1953 = vadd.f32 %v1922, %v1952
      %1954 = vmatmul.bf16.gmra.mxu0 %v1939
      %v1955 = vpop.f32.mrf.mxu0
      %v1956 = vadd.f32 %v1922, %v1955
      %v1957 = vpop.f32.mrf.mxu0
      %v1958 = vadd.f32 %v1922, %v1957
      %1959 = vdwg.mxu0
      %v1960 = vmax.f32 %v1951, 0.0
      %v1961 = vmax.f32 %v1953, 0.0
      %v1962 = vmax.f32 %v1956, 0.0
      %v1963 = vmax.f32 %v1958, 0.0
      %v1964 = vpack.c.bf16 %v1961, %v1960
      %v1965 = vpack.c.bf16 %v1963, %v1962
      %s1966 = scalar_lea.vmem %s7, 48
      %v1967 = vld [vmem:[%s1966] sm:$0xf]
      %v1968 = vld [vmem:[%s1966 + $0x4] sm:$0xf]
      %v1969 = vld [vmem:[%s1966 + $0x8] sm:$0xf]
      %v1970 = vld [vmem:[%s1966 + $0xc] sm:$0xf]
      %v1971 = vperm.slane %v1256, 6
      %v1976 = vunpack.c.l.b16 %v1967
      %v1977 = vunpack.c.l.b16 %v1968
      %v1978 = vunpack.c.l.b16 %v1969
      %v1979 = vunpack.c.l.b16 %v1970
      %v1980 = vpack.c.b16 %v1977, %v1976
      %v1981 = vpack.c.b16 %v1979, %v1978
      %v1985 = vsel %vm471, %v1964, 0
      %v1988 = vsel %vm471, %v1965, 0
      %1990 = vmatpush.bf16.msra.mxu0 0
      %1991 = vmatpush.bf16.msra.mxu0 0
      %1992 = vmatpush.bf16.msra.mxu0 0
      %1993 = vmatpush.bf16.msra.mxu0 0
      %1994 = vmatpush.bf16.msra.mxu0 0
      %1995 = vmatpush.bf16.msra.mxu0 0
      %1996 = vmatpush.bf16.msra.mxu0 %v1981
      %1997 = vmatpush.bf16.msra.mxu0 %v1980
      %1998 = vmatmul.bf16.gmra.mxu0 %v1985
      %v1999 = vpop.f32.mrf.mxu0
      %v2000 = vadd.f32 %v1971, %v1999
      %v2001 = vpop.f32.mrf.mxu0
      %v2002 = vadd.f32 %v1971, %v2001
      %2003 = vmatmul.bf16.gmra.mxu0 %v1988
      %v2004 = vpop.f32.mrf.mxu0
      %v2005 = vadd.f32 %v1971, %v2004
      %v2006 = vpop.f32.mrf.mxu0
      %v2007 = vadd.f32 %v1971, %v2006
      %2008 = vdwg.mxu0
      %v2009 = vadd.f32 %v2000, %v1911
      %v2010 = vadd.f32 %v2002, %v1912
      %v2011 = vadd.f32 %v2005, %v1913
      %v2012 = vadd.f32 %v2007, %v1914
      %v2013 = vmul.f32 %v2009, %v1234
      %v2014 = vmul.f32 %v2010, %v1239
      %v2015 = vmul.f32 %v2011, %v1244
      %v2016 = vmul.f32 %v2012, %v1249
      %v2017 = vsel %vm471, %v2013, 0.0
      %2018 = vadd.xlane.f32.xlu0 %v2017
      %v2019 = vpop.xlane.xlu0 %2018
      %v2020 = vsel %vm471, %v2014, 0.0
      %2021 = vadd.xlane.f32.xlu0 %v2020
      %v2022 = vpop.xlane.xlu0 %2021
      %v2023 = vsel %vm471, %v2015, 0.0
      %2024 = vadd.xlane.f32.xlu0 %v2023
      %v2025 = vpop.xlane.xlu0 %2024
      %v2026 = vsel %vm471, %v2016, 0.0
      %2027 = vadd.xlane.f32.xlu0 %v2026
      %v2028 = vpop.xlane.xlu0 %2027
      %v2029 = vmul.f32 %v2019, %v490
      %v2030 = vmul.f32 %v2022, %v490
      %v2031 = vmul.f32 %v2025, %v490
      %v2032 = vmul.f32 %v2028, %v490
      %v2033 = vsub.f32 %v2013, %v2029
      %v2034 = vsub.f32 %v2014, %v2030
      %v2035 = vsub.f32 %v2015, %v2031
      %v2036 = vsub.f32 %v2016, %v2032
      %v2037 = vmul.f32 %v2033, %v2033
      %v2038 = vmul.f32 %v2034, %v2034
      %v2039 = vmul.f32 %v2035, %v2035
      %v2040 = vmul.f32 %v2036, %v2036
      %v2041 = vsel %vm471, %v2037, 0.0
      %2042 = vadd.xlane.f32.xlu0 %v2041
      %v2043 = vpop.xlane.xlu0 %2042
      %v2044 = vsel %vm471, %v2038, 0.0
      %2045 = vadd.xlane.f32.xlu0 %v2044
      %v2046 = vpop.xlane.xlu0 %2045
      %v2047 = vsel %vm471, %v2039, 0.0
      %2048 = vadd.xlane.f32.xlu0 %v2047
      %v2049 = vpop.xlane.xlu0 %2048
      %v2050 = vsel %vm471, %v2040, 0.0
      %2051 = vadd.xlane.f32.xlu0 %v2050
      %v2052 = vpop.xlane.xlu0 %2051
      %v2053 = vmul.f32 %v2043, %v490
      %v2054 = vmul.f32 %v2046, %v490
      %v2055 = vmul.f32 %v2049, %v490
      %v2056 = vmul.f32 %v2052, %v490
      %v2057 = vadd.f32 %v2053, 1e-08
      %v2058 = vadd.f32 %v2054, 1e-08
      %v2059 = vadd.f32 %v2055, 1e-08
      %v2060 = vadd.f32 %v2056, 1e-08
      %v2061 = vrsqrt.pop %v2057
      %v2062 = vmul.f32 %v2061, %v2057
      %v2063 = vmul.f32 %v2062, %v2061
      %v2064 = vmul.f32 0.5, %v2063
      %v2065 = vsub.f32 1.5, %v2064
      %v2066 = vmul.f32 %v2061, %v2065
      %vm2067 = vweird.f32 %v2057
      %vm2068 = vweird.f32 %v2061
      %vm2069 = vmor %vm2067, %vm2068
      %v2070 = vsel %vm2069, %v2061, %v2066
      %v2071 = vrsqrt.pop %v2058
      %v2072 = vmul.f32 %v2071, %v2058
      %v2073 = vmul.f32 %v2072, %v2071
      %v2074 = vmul.f32 0.5, %v2073
      %v2075 = vsub.f32 1.5, %v2074
      %v2076 = vmul.f32 %v2071, %v2075
      %vm2077 = vweird.f32 %v2058
      %vm2078 = vweird.f32 %v2071
      %vm2079 = vmor %vm2077, %vm2078
      %v2080 = vsel %vm2079, %v2071, %v2076
      %v2081 = vrsqrt.pop %v2059
      %v2082 = vmul.f32 %v2081, %v2059
      %v2083 = vmul.f32 %v2082, %v2081
      %v2084 = vmul.f32 0.5, %v2083
      %v2085 = vsub.f32 1.5, %v2084
      %v2086 = vmul.f32 %v2081, %v2085
      %vm2087 = vweird.f32 %v2059
      %vm2088 = vweird.f32 %v2081
      %vm2089 = vmor %vm2087, %vm2088
      %v2090 = vsel %vm2089, %v2081, %v2086
      %v2091 = vrsqrt.pop %v2060
      %v2092 = vmul.f32 %v2091, %v2060
      %v2093 = vmul.f32 %v2092, %v2091
      %v2094 = vmul.f32 0.5, %v2093
      %v2095 = vsub.f32 1.5, %v2094
      %v2096 = vmul.f32 %v2091, %v2095
      %vm2097 = vweird.f32 %v2060
      %vm2098 = vweird.f32 %v2091
      %vm2099 = vmor %vm2097, %vm2098
      %v2100 = vsel %vm2099, %v2091, %v2096
      %v2101 = vmul.f32 %v2033, %v2070
      %v2102 = vmul.f32 %v2034, %v2080
      %v2103 = vmul.f32 %v2035, %v2090
      %v2104 = vmul.f32 %v2036, %v2100
      %v2105 = vperm.slane %v459, 0
      %v2106 = vmul.f32 %v2101, %v2105
      %v2107 = vmul.f32 %v2102, %v2105
      %v2108 = vmul.f32 %v2103, %v2105
      %v2109 = vmul.f32 %v2104, %v2105
      %v2110 = vperm.slane %v460, 0
      %v2111 = vadd.f32 %v2106, %v2110
      %v2112 = vadd.f32 %v2107, %v2110
      %v2113 = vadd.f32 %v2108, %v2110
      %v2114 = vadd.f32 %v2109, %v2110
      %v2115 = vld [vmem:[%s441] sm:$0xff]
      %v2116 = vld [vmem:[%s441 + $0x8] sm:$0xff]
      %v2117 = vld [vmem:[%s441 + $0x10] sm:$0xff]
      %v2118 = vld [vmem:[%s441 + $0x18] sm:$0xff]
      %v2119 = vmul.f32 %v2111, %v2115
      %v2120 = vmul.f32 %v2112, %v2116
      %v2121 = vmul.f32 %v2113, %v2117
      %v2122 = vmul.f32 %v2114, %v2118
      %v2123 = vpack.c.bf16 %v2120, %v2119
      %v2124 = vpack.c.bf16 %v2122, %v2121
      %v2126 = vsel %vm471, 1065369472, 0
      %v2129 = vsel %vm471, %v2123, 0
      %v2132 = vsel %vm471, %v2124, 0
      %2134 = vmatpush.bf16.xpose.msra.mxu0 0
      %2135 = vmatpush.bf16.xpose.msra.mxu0 0
      %2136 = vmatpush.bf16.xpose.msra.mxu0 0
      %2137 = vmatpush.bf16.xpose.msra.mxu0 0
      %2138 = vmatpush.bf16.xpose.msra.mxu0 0
      %2139 = vmatpush.bf16.xpose.msra.mxu0 0
      %2140 = vmatpush.bf16.xpose.msra.mxu0 %v2132
      %2141 = vmatpush.bf16.xpose.msra.mxu0 %v2129
      %2142 = vmatmul.bf16.gmra.mxu0 %v2126
      %v2143 = vpop.f32.mrf.mxu0
      %v2144 = vadd.f32 0.0, %v2143
      %v2145 = vpop.f32.mrf.mxu0
      %2146 = vdwg.mxu0
      %v2147 = vld [vmem:[%s447] sm:$0xff]
      %v2148 = vld [vmem:[%s447 + $0x8] sm:$0xff]
      %v2149 = vld [vmem:[%s447 + $0x10] sm:$0xff]
      %v2150 = vld [vmem:[%s447 + $0x18] sm:$0xff]
      %v2151 = vmul.f32 %v2111, %v2147
      %v2152 = vmul.f32 %v2112, %v2148
      %v2153 = vmul.f32 %v2113, %v2149
      %v2154 = vmul.f32 %v2114, %v2150
      %v2155 = vpack.c.bf16 %v2152, %v2151
      %v2156 = vpack.c.bf16 %v2154, %v2153
      %v2158 = vsel %vm471, %v2155, 0
      %v2161 = vsel %vm471, %v2156, 0
      %2163 = vmatpush.bf16.xpose.msra.mxu0 0
      %2164 = vmatpush.bf16.xpose.msra.mxu0 0
      %2165 = vmatpush.bf16.xpose.msra.mxu0 0
      %2166 = vmatpush.bf16.xpose.msra.mxu0 0
      %2167 = vmatpush.bf16.xpose.msra.mxu0 0
      %2168 = vmatpush.bf16.xpose.msra.mxu0 0
      %2169 = vmatpush.bf16.xpose.msra.mxu0 %v2161
      %2170 = vmatpush.bf16.xpose.msra.mxu0 %v2158
      %2171 = vmatmul.bf16.gmra.mxu0 %v2126
      %v2172 = vpop.f32.mrf.mxu0
      %v2173 = vadd.f32 0.0, %v2172
      %v2174 = vpop.f32.mrf.mxu0
      %2175 = vdwg.mxu0
      %vm2176 = vcmask 253952
      %2177 = vst.msk [vmem:[%s452] sm:$0x1] %vm2176, %v2144
      %2178 = vst.msk [vmem:[%s452 + $0x1] sm:$0x1] %vm2176, %v2173
      %p2179 = scmp.lt.s32.totalorder %s22, 7
      %s2180 = scalar_select %p2179, %s22, 7
      %s2181 = smul.addr %s2180, 2
      %s2182 = scalar_lea.vmem %s11, %s2181
      // Predicated region
      $region65: #{sasrec_forward.1} parent=63 // pred_check
        %p2183 = pneg %p291
      $region66: #{sasrec_forward.1} parent=63 // pred_check_branch
        %2185 = sbr.rel (%p2183) target = $region68
      $region67: #{sasrec_forward.1} parent=63 // pred_region
        _
      $region68: #{sasrec_forward.1} parent=63 // pred_fallthru
        _
    $region64: #{sasrec_forward.1} parent=5 // pred_fallthru
      _
    %p2186 = scmp.le.s32.totalorder 2, %s17
    // Predicated region
    $region69: #{sasrec_forward.1} parent=5 // pred_check
      %p2187 = pneg %p2186
    $region70: #{sasrec_forward.1} parent=5 // pred_check_branch
      %2189 = sbr.rel (%p2187) target = $region72
    $region71: #{sasrec_forward.1} parent=5 // pred_region
      %s2190 = ssub.s32 %s17, 2
      // Predicated region
      $region73: #{sasrec_forward.1} parent=71 // pred_check
        %p2191 = pneg %p297
      $region74: #{sasrec_forward.1} parent=71 // pred_check_branch
        %2193 = sbr.rel (%p2191) target = $region76
      $region75: #{sasrec_forward.1} parent=71 // pred_region
        %p2194 = scmp.lt.s32.totalorder %s23, 7
        %s2195 = scalar_select %p2194, %s23, 7
        %s2196 = smul.addr %s2195, 2
        %s2197 = scalar_lea.vmem %s11, %s2196
      $region76: #{sasrec_forward.1} parent=71 // pred_fallthru
        _
    $region72: #{sasrec_forward.1} parent=5 // pred_fallthru
      _
  $region6: #{sasrec_forward.1} parent=0 // loop_footer
    %s21 = sadd.s32 1, %s17
  $region7: #{sasrec_forward.1} parent=0 // loop_footer_branch
    %16 = sbr.rel target = $region3
  $region8: #{sasrec_forward.1} parent=0 // loop_exit
    _

</llo_original>
